<compile_context>
chip_gen: v6e
topology: v6e:2x2x1
jax: 0.10.0
libtpu: 0.0.40
codegen_flags: <defaults>
</compile_context>

<pallas_src>
import jax
import jax.numpy as jnp
from jax.experimental import pallas as pl
from jax.experimental.pallas import tpu as pltpu


# ----------------------------- Pallas kernel ------------------------------ #

def attn_classifier_kernel(
    emb_ref, mask_ref, dir_ref,
    wih_ref, whh_ref, bias_ref,
    w1_ref, b1_ref, w2_ref, b2_ref,
    wf_ref, bf_ref,
    logits_ref, attn_ref,
    xg_ref, out_ref,
):
    B, T = attn_ref.shape                 # (batch_pad, seq_len)
    H = out_ref.shape[1]                  # hidden dim per direction
    G = 8 * H                             # fused gate width (both directions)

    # 1) Fused input projection (+ bias): ONE (T*B, E) @ (E, 8H) MXU matmul
    #    covering every timestep of both directions, stored as bf16 gates.
    xg_ref[...] = (jnp.dot(emb_ref[...], wih_ref[...],
                           preferred_element_type=jnp.float32)
                   + bias_ref[...]).astype(jnp.bfloat16)

    whh = whh_ref[...]                    # (2H, 8H) block-diagonal, bf16

    # Direction selectors (no iota division): 1.0 on forward H-blocks.
    fwd_g = jnp.broadcast_to(dir_ref[...], (B, G)) > 0.5      # (B, 8H)
    fwd_s = fwd_g[:, :2 * H]                                   # (B, 2H) [fwd|bwd]

    out_ref[...] = jnp.zeros_like(out_ref)

    # 2) Packed fwd+bwd recurrence, fully unrolled (T static, small):
    #    iteration s advances fwd at t=s and bwd at t=T-1-s with ONE matmul.
    hp = jnp.zeros((B, 2 * H), jnp.float32)                    # [h_f | h_b]
    cp = jnp.zeros((B, 2 * H), jnp.float32)
    for s in range(T):
        tb = T - 1 - s
        # per-step gates: fwd lanes from timestep s, bwd lanes from timestep tb
        xg = jnp.where(fwd_g,
                       xg_ref[s * B:(s + 1) * B, :],
                       xg_ref[tb * B:(tb + 1) * B, :]).astype(jnp.float32)
        g = xg + jnp.dot(hp.astype(jnp.bfloat16), whh,
                         preferred_element_type=jnp.float32)   # (B, 8H) f32
        # gate layout [i_f,i_b,f_f,f_b,o_f,o_b,g_f,g_b]: one sigmoid slab,
        # one tanh slab (both directions at once).
        sg = jax.nn.sigmoid(g[:, :6 * H])                      # (B, 6H)
        gg = jnp.tanh(g[:, 6 * H:])                            # (B, 2H)
        c_new = sg[:, 2 * H:4 * H] * cp + sg[:, :2 * H] * gg   # packed cell
        h_new = sg[:, 4 * H:6 * H] * jnp.tanh(c_new)
        # packed validity mask (lane-dense, whole-slab select; no (B,1) loads)
        v = jnp.where(fwd_s,
                      mask_ref[s * B:(s + 1) * B, :],
                      mask_ref[tb * B:(tb + 1) * B, :]) > 0.5  # (B, 2H)
        hp = jnp.where(v, h_new, hp)
        cp = jnp.where(v, c_new, cp)
        # accumulate fwd+bwd hidden into one output slab (zero where padded)
        out_ref[s * B:(s + 1) * B, :] = (
            out_ref[s * B:(s + 1) * B, :] + jnp.where(v[:, :H], h_new[:, :H], 0.0))
        out_ref[tb * B:(tb + 1) * B, :] = (
            out_ref[tb * B:(tb + 1) * B, :] + jnp.where(v[:, H:], h_new[:, H:], 0.0))

    # 3) Attention MLP, batched over all (t, b) rows.
    out_all = out_ref[...]                                     # (T*B, H) f32
    hid = jnp.maximum(
        jnp.dot(out_all.astype(jnp.bfloat16), w1_ref[...],
                preferred_element_type=jnp.float32) + b1_ref[...], 0.0)  # (T*B,64)
    # Second attention layer as a matmul against w2 replicated across H lanes:
    # every lane of row (t*B+b) holds the same raw energy for that (t, b).
    r = jnp.dot(hid.astype(jnp.bfloat16), w2_ref[...],
                preferred_element_type=jnp.float32)            # (T*B, H)

    # Energy in lane-dense (B, T): pure-VPU diagonal extraction, no XLU
    # reduces and no concatenation of (B,1) pieces.
    lane_t = jax.lax.broadcasted_iota(jnp.int32, (B, T), 1)
    energy = jnp.zeros((B, T), jnp.float32)
    for t in range(T):
        energy = energy + jnp.where(lane_t == t, r[t * B:(t + 1) * B, :T], 0.0)
    energy = energy + b2_ref[...]

    # softmax over the sequence axis (lanes); exact reciprocal per review.
    emax = jnp.max(energy, axis=-1, keepdims=True)             # (B, 1)
    p = jnp.exp(energy - emax)
    rinv = pl.reciprocal(jnp.sum(p, axis=-1, keepdims=True), approx=False)
    attn_ref[...] = p * rinv                                   # (B, T) dense store

    # 4) Context + head: reuse the lane-replicated energies so no per-t
    #    lane-broadcast of attention weights is needed.
    shift = jnp.broadcast_to(b2_ref[...] - emax, (B, H))       # (B, H)
    ctx = jnp.zeros((B, H), jnp.float32)
    for t in range(T):
        ctx = ctx + out_all[t * B:(t + 1) * B, :] * jnp.exp(
            r[t * B:(t + 1) * B, :] + shift)
    ctx = ctx * rinv
    logits_ref[...] = (jnp.sum(ctx * wf_ref[...], axis=-1, keepdims=True)
                       + bf_ref[...])                          # (B, 1)


# ------------------------------ wrapper ----------------------------------- #

def attn_classifier_forward(inputs, lengths, p):
    """inputs: (T, B) int32 token ids, lengths: (B,) int32 (descending)."""
    T, B = inputs.shape
    E = p["emb"].shape[1]
    H = p["whh_f_T"].shape[0]
    assert T <= H, "energy extraction uses the first T lanes of the H-wide slab"

    # Pad batch to the 8-sublane width; padded rows get length 0 (fully masked).
    B_pad = max(8, -(-B // 8) * 8)
    pad = B_pad - B
    inputs_p = jnp.pad(inputs, ((0, 0), (0, pad)))
    lengths_p = jnp.pad(lengths, (0, pad))

    # Embedding gather stays in XLA (glue); rows are time-major: index t*B + b.
    emb = p["emb"][inputs_p].reshape(T * B_pad, E).astype(jnp.bfloat16)

    # Validity mask, lane-dense over the packed 2H state: row t*B+b holds
    # (t < length[b]) replicated across all 2H lanes.
    mask_tb = (jnp.arange(T)[:, None] < lengths_p[None, :]).astype(jnp.float32)
    maskbc = jnp.broadcast_to(mask_tb.reshape(T * B_pad, 1), (T * B_pad, 2 * H))

    # Direction selector over the fused 8H gate lanes: 1.0 on fwd blocks.
    dirsel = jnp.tile(
        jnp.concatenate([jnp.ones((1, H), jnp.float32),
                         jnp.zeros((1, H), jnp.float32)], axis=1), (1, 4))

    # Fused / packed weights: global gate layout [i_f,i_b,f_f,f_b,o_f,o_b,g_f,g_b].
    def fuse_gates(wf, wb):
        parts = []
        for gi in (0, 1, 3, 2):            # PyTorch i,f,g,o -> i,f,o,g (tanh last)
            parts.append(wf[:, gi * H:(gi + 1) * H])
            parts.append(wb[:, gi * H:(gi + 1) * H])
        return jnp.concatenate(parts, axis=-1)

    wih_cat = fuse_gates(p["wih_f_T"], p["wih_b_T"])             # (E, 8H)
    b_cat = fuse_gates(p["b_f"], p["b_b"])                       # (1, 8H)
    z = jnp.zeros((H, 4 * H), jnp.float32)
    whh_bd = fuse_gates(jnp.concatenate([p["whh_f_T"], z], axis=0),
                        jnp.concatenate([z, p["whh_b_T"]], axis=0))  # (2H, 8H)
    w2rep = jnp.broadcast_to(p["w2_T"], (p["w2_T"].shape[0], H))     # (64, H)

    bf16 = lambda a: a.astype(jnp.bfloat16)
    vmem = pl.BlockSpec(memory_space=pltpu.MemorySpace.VMEM)
    logits, attn = pl.pallas_call(
        attn_classifier_kernel,
        out_shape=(jax.ShapeDtypeStruct((B_pad, 1), jnp.float32),
                   jax.ShapeDtypeStruct((B_pad, T), jnp.float32)),
        in_specs=[vmem] * 12,
        out_specs=(vmem, vmem),
        scratch_shapes=[
            pltpu.VMEM((T * B_pad, 8 * H), jnp.bfloat16),   # fused precomputed gates
            pltpu.VMEM((T * B_pad, H), jnp.float32),        # fwd+bwd hidden sum
        ],
    )(emb, maskbc, dirsel,
      bf16(wih_cat), bf16(whh_bd), b_cat,
      bf16(p["w1_T"]), p["b1"], bf16(w2rep), p["b2"],
      p["wf_T"].T, p["bf"])

    return logits[:B], attn[:B]


# ------------------------- pure-JAX reference ------------------------------ #

def _lstm_scan(emb, mask, wih_T, whh_T, b, reverse):
    H = whh_T.shape[0]
    B = emb.shape[1]

    def step(carry, xm):
        h, c = carry
        x, m = xm
        gates = x @ wih_T + h @ whh_T + b
        i = jax.nn.sigmoid(gates[:, :H])
        f = jax.nn.sigmoid(gates[:, H:2 * H])
        g = jnp.tanh(gates[:, 2 * H:3 * H])
        o = jax.nn.sigmoid(gates[:, 3 * H:])
        c_new = f * c + i * g
        h_new = o * jnp.tanh(c_new)
        c_u = m * c_new + (1.0 - m) * c
        h_u = m * h_new + (1.0 - m) * h
        return (h_u, c_u), m * h_new

    init = (jnp.zeros((B, H), jnp.float32), jnp.zeros((B, H), jnp.float32))
    _, outs = jax.lax.scan(step, init, (emb, mask), reverse=reverse)
    return outs


def reference_forward(inputs, lengths, p):
    emb = p["emb"][inputs]
    T, B, _ = emb.shape
    mask = (jnp.arange(T)[:, None] < lengths[None, :]).astype(jnp.float32)[:, :, None]
    out = (_lstm_scan(emb, mask, p["wih_f_T"], p["whh_f_T"], p["b_f"], False)
           + _lstm_scan(emb, mask, p["wih_b_T"], p["whh_b_T"], p["b_b"], True))
    hid = jax.nn.relu(out @ p["w1_T"] + p["b1"])
    energy = (hid @ p["w2_T"] + p["b2"])[:, :, 0]        # (T, B)
    w = jax.nn.softmax(energy, axis=0)
    ctx = jnp.sum(out * w[:, :, None], axis=0)
    logits = ctx @ p["wf_T"] + p["bf"]
    return logits, w.T


# ------------------------------- params ------------------------------------ #

def init_params(key, vocab, E, H):
    ks = jax.random.split(key, 13)

    def u(k, shape, s=0.1):
        return jax.random.uniform(k, shape, jnp.float32, -s, s)

    return {
        "emb": u(ks[0], (vocab, E), 0.5),     # nn.Embedding(input_dim, embedding_dim)
        "wih_f_T": u(ks[1], (E, 4 * H)),      # LSTM fwd W_ih^T (gate order i,f,g,o)
        "whh_f_T": u(ks[2], (H, 4 * H)),      # LSTM fwd W_hh^T
        "b_f": u(ks[3], (1, 4 * H)),          # b_ih + b_hh (combined)
        "wih_b_T": u(ks[4], (E, 4 * H)),      # LSTM bwd
        "whh_b_T": u(ks[5], (H, 4 * H)),
        "b_b": u(ks[6], (1, 4 * H)),
        "w1_T": u(ks[7], (H, 64)),            # attention Linear(H, 64)
        "b1": u(ks[8], (1, 64)),
        "w2_T": u(ks[9], (64, 1)),            # attention Linear(64, 1)
        "b2": u(ks[10], (1, 1)),
        "wf_T": u(ks[11], (H, 1)),            # fc Linear(H, 1)
        "bf": u(ks[12], (1, 1)),
    }


if __name__ == "__main__":
    T, B = 8, 4            # seq_len, batch
    vocab, E, H = 50, 32, 32

    key = jax.random.PRNGKey(0)
    k_in, k_par = jax.random.split(key)
    inputs = jax.random.randint(k_in, (T, B), 0, vocab, dtype=jnp.int32)
    lengths = jnp.array([8, 7, 5, 3], dtype=jnp.int32)   # sorted desc (pack_padded req.)
    params = init_params(k_par, vocab, E, H)

    logits, attn = attn_classifier_forward(inputs, lengths, params)
    logits = jax.block_until_ready(logits)
    attn = jax.block_until_ready(attn)

    ref_logits, ref_attn = reference_forward(inputs, lengths, params)

    assert logits.shape == (B, 1) and attn.shape == (B, T)
    assert bool(jnp.all(jnp.isfinite(logits))) and bool(jnp.all(jnp.isfinite(attn)))
    # bf16 matmul operands / bf16 gate scratch vs. an f32 reference -> wider tol.
    assert bool(jnp.allclose(logits, ref_logits, atol=2e-2, rtol=2e-2))
    assert bool(jnp.allclose(attn, ref_attn, atol=2e-2, rtol=2e-2))

    print("KERNEL_OK")
</pallas_src>

<mosaic_0001>
module attributes {stable_mosaic.version = 11 : i64} {
  func.func @attn_classifier_kernel(%arg0: memref<64x32xbf16, #tpu.memory_space<vmem>>, %arg1: memref<64x64xf32, #tpu.memory_space<vmem>>, %arg2: memref<1x256xf32, #tpu.memory_space<vmem>>, %arg3: memref<32x256xbf16, #tpu.memory_space<vmem>>, %arg4: memref<64x256xbf16, #tpu.memory_space<vmem>>, %arg5: memref<1x256xf32, #tpu.memory_space<vmem>>, %arg6: memref<32x64xbf16, #tpu.memory_space<vmem>>, %arg7: memref<1x64xf32, #tpu.memory_space<vmem>>, %arg8: memref<64x32xbf16, #tpu.memory_space<vmem>>, %arg9: memref<1x1xf32, #tpu.memory_space<vmem>>, %arg10: memref<1x32xf32, #tpu.memory_space<vmem>>, %arg11: memref<1x1xf32, #tpu.memory_space<vmem>>, %arg12: memref<8x1xf32, #tpu.memory_space<vmem>>, %arg13: memref<8x8xf32, #tpu.memory_space<vmem>>, %arg14: memref<64x256xbf16, #tpu.memory_space<vmem>>, %arg15: memref<64x32xf32, #tpu.memory_space<vmem>>) attributes {dimension_semantics = [], scalar_prefetch = 0 : i64, scratch_operands = 2 : i64, tpu.core_type = #tpu.core_type<tc>} {
    %c0 = arith.constant 0 : index
    %c0_0 = arith.constant 0 : index
    %0 = vector.load %arg0[%c0, %c0_0] : memref<64x32xbf16, #tpu.memory_space<vmem>>, vector<64x32xbf16>
    %c0_1 = arith.constant 0 : index
    %c0_2 = arith.constant 0 : index
    %1 = vector.load %arg3[%c0_1, %c0_2] : memref<32x256xbf16, #tpu.memory_space<vmem>>, vector<32x256xbf16>
    %cst = arith.constant dense<0.000000e+00> : vector<64x256xf32>
    %2 = tpu.matmul %0, %1, %cst {dimension_numbers = #tpu.dot_dimension_numbers<[1], [0], [0], [1], [0, 0, 1, 1], [], []>} : vector<64x32xbf16>, vector<32x256xbf16>, vector<64x256xf32> -> vector<64x256xf32>
    %c0_3 = arith.constant 0 : index
    %c0_4 = arith.constant 0 : index
    %3 = vector.load %arg5[%c0_3, %c0_4] : memref<1x256xf32, #tpu.memory_space<vmem>>, vector<1x256xf32>
    %4 = vector.broadcast %3 : vector<1x256xf32> to vector<64x256xf32>
    %5 = arith.addf %2, %4 : vector<64x256xf32>
    %6 = arith.truncf %5 : vector<64x256xf32> to vector<64x256xbf16>
    %c0_5 = arith.constant 0 : index
    %c0_6 = arith.constant 0 : index
    %7 = vector.load %arg14[%c0_5, %c0_6] : memref<64x256xbf16, #tpu.memory_space<vmem>>, vector<64x256xbf16>
    tpu.vector_store %arg14[%c0_5, %c0_6], %6 {strides = array<i32>} : memref<64x256xbf16, #tpu.memory_space<vmem>>, vector<64x256xbf16>,
    %c0_7 = arith.constant 0 : index
    %c0_8 = arith.constant 0 : index
    %8 = vector.load %arg4[%c0_7, %c0_8] : memref<64x256xbf16, #tpu.memory_space<vmem>>, vector<64x256xbf16>
    %c0_9 = arith.constant 0 : index
    %c0_10 = arith.constant 0 : index
    %9 = vector.load %arg2[%c0_9, %c0_10] : memref<1x256xf32, #tpu.memory_space<vmem>>, vector<1x256xf32>
    %10 = vector.shape_cast %9 : vector<1x256xf32> to vector<1x256xf32>
    %11 = vector.broadcast %10 : vector<1x256xf32> to vector<8x256xf32>
    %cst_11 = arith.constant 5.000000e-01 : f32
    %12 = vector.broadcast %cst_11 : f32 to vector<8x256xf32>
    %13 = arith.cmpf ogt, %11, %12 : vector<8x256xf32>
    %14 = vector.extract_strided_slice %13 {offsets = [0, 0], sizes = [8, 64], strides = [1, 1]} : vector<8x256xi1> to vector<8x64xi1>
    %cst_12 = arith.constant 0.000000e+00 : f32
    %15 = vector.broadcast %cst_12 : f32 to vector<64x32xf32>
    %c0_13 = arith.constant 0 : index
    %c0_14 = arith.constant 0 : index
    %16 = vector.load %arg15[%c0_13, %c0_14] : memref<64x32xf32, #tpu.memory_space<vmem>>, vector<64x32xf32>
    tpu.vector_store %arg15[%c0_13, %c0_14], %15 {strides = array<i32>} : memref<64x32xf32, #tpu.memory_space<vmem>>, vector<64x32xf32>,
    %cst_15 = arith.constant 0.000000e+00 : f32
    %17 = vector.broadcast %cst_15 : f32 to vector<8x64xf32>
    %cst_16 = arith.constant 0.000000e+00 : f32
    %18 = vector.broadcast %cst_16 : f32 to vector<8x64xf32>
    %c0_17 = arith.constant 0 : index
    %c0_18 = arith.constant 0 : index
    %19 = vector.load %arg14[%c0_17, %c0_18] : memref<64x256xbf16, #tpu.memory_space<vmem>>, vector<8x256xbf16>
    %c56 = arith.constant 56 : index
    %c0_19 = arith.constant 0 : index
    %20 = vector.load %arg14[%c56, %c0_19] : memref<64x256xbf16, #tpu.memory_space<vmem>>, vector<8x256xbf16>
    %21 = arith.select %13, %19, %20 : vector<8x256xi1>, vector<8x256xbf16>
    %22 = arith.extf %21 : vector<8x256xbf16> to vector<8x256xf32>
    %23 = arith.truncf %17 : vector<8x64xf32> to vector<8x64xbf16>
    %cst_20 = arith.constant dense<0.000000e+00> : vector<8x256xf32>
    %24 = tpu.matmul %23, %8, %cst_20 {dimension_numbers = #tpu.dot_dimension_numbers<[1], [0], [0], [1], [0, 0, 1, 1], [], []>} : vector<8x64xbf16>, vector<64x256xbf16>, vector<8x256xf32> -> vector<8x256xf32>
    %25 = arith.addf %22, %24 : vector<8x256xf32>
    %26 = vector.extract_strided_slice %25 {offsets = [0, 0], sizes = [8, 192], strides = [1, 1]} : vector<8x256xf32> to vector<8x192xf32>
    %27 = arith.negf %26 : vector<8x192xf32>
    %28 = math.exp %27 : vector<8x192xf32>
    %cst_21 = arith.constant 1.000000e+00 : f32
    %29 = vector.broadcast %cst_21 : f32 to vector<8x192xf32>
    %30 = arith.addf %29, %28 : vector<8x192xf32>
    %31 = arith.divf %29, %30 : vector<8x192xf32>
    %32 = vector.extract_strided_slice %25 {offsets = [0, 192], sizes = [8, 64], strides = [1, 1]} : vector<8x256xf32> to vector<8x64xf32>
    %33 = math.tanh %32 : vector<8x64xf32>
    %34 = vector.extract_strided_slice %31 {offsets = [0, 64], sizes = [8, 64], strides = [1, 1]} : vector<8x192xf32> to vector<8x64xf32>
    %35 = arith.mulf %34, %18 : vector<8x64xf32>
    %36 = vector.extract_strided_slice %31 {offsets = [0, 0], sizes = [8, 64], strides = [1, 1]} : vector<8x192xf32> to vector<8x64xf32>
    %37 = arith.mulf %36, %33 : vector<8x64xf32>
    %38 = arith.addf %35, %37 : vector<8x64xf32>
    %39 = vector.extract_strided_slice %31 {offsets = [0, 128], sizes = [8, 64], strides = [1, 1]} : vector<8x192xf32> to vector<8x64xf32>
    %40 = math.tanh %38 : vector<8x64xf32>
    %41 = arith.mulf %39, %40 : vector<8x64xf32>
    %c0_22 = arith.constant 0 : index
    %c0_23 = arith.constant 0 : index
    %42 = vector.load %arg1[%c0_22, %c0_23] : memref<64x64xf32, #tpu.memory_space<vmem>>, vector<8x64xf32>
    %c56_24 = arith.constant 56 : index
    %c0_25 = arith.constant 0 : index
    %43 = vector.load %arg1[%c56_24, %c0_25] : memref<64x64xf32, #tpu.memory_space<vmem>>, vector<8x64xf32>
    %44 = arith.select %14, %42, %43 : vector<8x64xi1>, vector<8x64xf32>
    %cst_26 = arith.constant 5.000000e-01 : f32
    %45 = vector.broadcast %cst_26 : f32 to vector<8x64xf32>
    %46 = arith.cmpf ogt, %44, %45 : vector<8x64xf32>
    %47 = arith.select %46, %41, %17 : vector<8x64xi1>, vector<8x64xf32>
    %48 = arith.select %46, %38, %18 : vector<8x64xi1>, vector<8x64xf32>
    %c0_27 = arith.constant 0 : index
    %c0_28 = arith.constant 0 : index
    %49 = vector.load %arg15[%c0_27, %c0_28] : memref<64x32xf32, #tpu.memory_space<vmem>>, vector<8x32xf32>
    %50 = vector.extract_strided_slice %46 {offsets = [0, 0], sizes = [8, 32], strides = [1, 1]} : vector<8x64xi1> to vector<8x32xi1>
    %51 = vector.extract_strided_slice %41 {offsets = [0, 0], sizes = [8, 32], strides = [1, 1]} : vector<8x64xf32> to vector<8x32xf32>
    %cst_29 = arith.constant 0.000000e+00 : f32
    %52 = vector.broadcast %cst_29 : f32 to vector<8x32xf32>
    %53 = arith.select %50, %51, %52 : vector<8x32xi1>, vector<8x32xf32>
    %54 = arith.addf %49, %53 : vector<8x32xf32>
    %c0_30 = arith.constant 0 : index
    %c0_31 = arith.constant 0 : index
    %55 = vector.load %arg15[%c0_30, %c0_31] : memref<64x32xf32, #tpu.memory_space<vmem>>, vector<8x32xf32>
    tpu.vector_store %arg15[%c0_30, %c0_31], %54 {strides = array<i32>} : memref<64x32xf32, #tpu.memory_space<vmem>>, vector<8x32xf32>,
    %c56_32 = arith.constant 56 : index
    %c0_33 = arith.constant 0 : index
    %56 = vector.load %arg15[%c56_32, %c0_33] : memref<64x32xf32, #tpu.memory_space<vmem>>, vector<8x32xf32>
    %57 = vector.extract_strided_slice %46 {offsets = [0, 32], sizes = [8, 32], strides = [1, 1]} : vector<8x64xi1> to vector<8x32xi1>
    %58 = vector.extract_strided_slice %41 {offsets = [0, 32], sizes = [8, 32], strides = [1, 1]} : vector<8x64xf32> to vector<8x32xf32>
    %cst_34 = arith.constant 0.000000e+00 : f32
    %59 = vector.broadcast %cst_34 : f32 to vector<8x32xf32>
    %60 = arith.select %57, %58, %59 : vector<8x32xi1>, vector<8x32xf32>
    %61 = arith.addf %56, %60 : vector<8x32xf32>
    %c56_35 = arith.constant 56 : index
    %c0_36 = arith.constant 0 : index
    %62 = vector.load %arg15[%c56_35, %c0_36] : memref<64x32xf32, #tpu.memory_space<vmem>>, vector<8x32xf32>
    tpu.vector_store %arg15[%c56_35, %c0_36], %61 {strides = array<i32>} : memref<64x32xf32, #tpu.memory_space<vmem>>, vector<8x32xf32>,
    %c8 = arith.constant 8 : index
    %c0_37 = arith.constant 0 : index
    %63 = vector.load %arg14[%c8, %c0_37] : memref<64x256xbf16, #tpu.memory_space<vmem>>, vector<8x256xbf16>
    %c48 = arith.constant 48 : index
    %c0_38 = arith.constant 0 : index
    %64 = vector.load %arg14[%c48, %c0_38] : memref<64x256xbf16, #tpu.memory_space<vmem>>, vector<8x256xbf16>
    %65 = arith.select %13, %63, %64 : vector<8x256xi1>, vector<8x256xbf16>
    %66 = arith.extf %65 : vector<8x256xbf16> to vector<8x256xf32>
    %67 = arith.truncf %47 : vector<8x64xf32> to vector<8x64xbf16>
    %cst_39 = arith.constant dense<0.000000e+00> : vector<8x256xf32>
    %68 = tpu.matmul %67, %8, %cst_39 {dimension_numbers = #tpu.dot_dimension_numbers<[1], [0], [0], [1], [0, 0, 1, 1], [], []>} : vector<8x64xbf16>, vector<64x256xbf16>, vector<8x256xf32> -> vector<8x256xf32>
    %69 = arith.addf %66, %68 : vector<8x256xf32>
    %70 = vector.extract_strided_slice %69 {offsets = [0, 0], sizes = [8, 192], strides = [1, 1]} : vector<8x256xf32> to vector<8x192xf32>
    %71 = arith.negf %70 : vector<8x192xf32>
    %72 = math.exp %71 : vector<8x192xf32>
    %cst_40 = arith.constant 1.000000e+00 : f32
    %73 = vector.broadcast %cst_40 : f32 to vector<8x192xf32>
    %74 = arith.addf %73, %72 : vector<8x192xf32>
    %75 = arith.divf %73, %74 : vector<8x192xf32>
    %76 = vector.extract_strided_slice %69 {offsets = [0, 192], sizes = [8, 64], strides = [1, 1]} : vector<8x256xf32> to vector<8x64xf32>
    %77 = math.tanh %76 : vector<8x64xf32>
    %78 = vector.extract_strided_slice %75 {offsets = [0, 64], sizes = [8, 64], strides = [1, 1]} : vector<8x192xf32> to vector<8x64xf32>
    %79 = arith.mulf %78, %48 : vector<8x64xf32>
    %80 = vector.extract_strided_slice %75 {offsets = [0, 0], sizes = [8, 64], strides = [1, 1]} : vector<8x192xf32> to vector<8x64xf32>
    %81 = arith.mulf %80, %77 : vector<8x64xf32>
    %82 = arith.addf %79, %81 : vector<8x64xf32>
    %83 = vector.extract_strided_slice %75 {offsets = [0, 128], sizes = [8, 64], strides = [1, 1]} : vector<8x192xf32> to vector<8x64xf32>
    %84 = math.tanh %82 : vector<8x64xf32>
    %85 = arith.mulf %83, %84 : vector<8x64xf32>
    %c8_41 = arith.constant 8 : index
    %c0_42 = arith.constant 0 : index
    %86 = vector.load %arg1[%c8_41, %c0_42] : memref<64x64xf32, #tpu.memory_space<vmem>>, vector<8x64xf32>
    %c48_43 = arith.constant 48 : index
    %c0_44 = arith.constant 0 : index
    %87 = vector.load %arg1[%c48_43, %c0_44] : memref<64x64xf32, #tpu.memory_space<vmem>>, vector<8x64xf32>
    %88 = arith.select %14, %86, %87 : vector<8x64xi1>, vector<8x64xf32>
    %cst_45 = arith.constant 5.000000e-01 : f32
    %89 = vector.broadcast %cst_45 : f32 to vector<8x64xf32>
    %90 = arith.cmpf ogt, %88, %89 : vector<8x64xf32>
    %91 = arith.select %90, %85, %47 : vector<8x64xi1>, vector<8x64xf32>
    %92 = arith.select %90, %82, %48 : vector<8x64xi1>, vector<8x64xf32>
    %c8_46 = arith.constant 8 : index
    %c0_47 = arith.constant 0 : index
    %93 = vector.load %arg15[%c8_46, %c0_47] : memref<64x32xf32, #tpu.memory_space<vmem>>, vector<8x32xf32>
    %94 = vector.extract_strided_slice %90 {offsets = [0, 0], sizes = [8, 32], strides = [1, 1]} : vector<8x64xi1> to vector<8x32xi1>
    %95 = vector.extract_strided_slice %85 {offsets = [0, 0], sizes = [8, 32], strides = [1, 1]} : vector<8x64xf32> to vector<8x32xf32>
    %cst_48 = arith.constant 0.000000e+00 : f32
    %96 = vector.broadcast %cst_48 : f32 to vector<8x32xf32>
    %97 = arith.select %94, %95, %96 : vector<8x32xi1>, vector<8x32xf32>
    %98 = arith.addf %93, %97 : vector<8x32xf32>
    %c8_49 = arith.constant 8 : index
    %c0_50 = arith.constant 0 : index
    %99 = vector.load %arg15[%c8_49, %c0_50] : memref<64x32xf32, #tpu.memory_space<vmem>>, vector<8x32xf32>
    tpu.vector_store %arg15[%c8_49, %c0_50], %98 {strides = array<i32>} : memref<64x32xf32, #tpu.memory_space<vmem>>, vector<8x32xf32>,
    %c48_51 = arith.constant 48 : index
    %c0_52 = arith.constant 0 : index
    %100 = vector.load %arg15[%c48_51, %c0_52] : memref<64x32xf32, #tpu.memory_space<vmem>>, vector<8x32xf32>
    %101 = vector.extract_strided_slice %90 {offsets = [0, 32], sizes = [8, 32], strides = [1, 1]} : vector<8x64xi1> to vector<8x32xi1>
    %102 = vector.extract_strided_slice %85 {offsets = [0, 32], sizes = [8, 32], strides = [1, 1]} : vector<8x64xf32> to vector<8x32xf32>
    %cst_53 = arith.constant 0.000000e+00 : f32
    %103 = vector.broadcast %cst_53 : f32 to vector<8x32xf32>
    %104 = arith.select %101, %102, %103 : vector<8x32xi1>, vector<8x32xf32>
    %105 = arith.addf %100, %104 : vector<8x32xf32>
    %c48_54 = arith.constant 48 : index
    %c0_55 = arith.constant 0 : index
    %106 = vector.load %arg15[%c48_54, %c0_55] : memref<64x32xf32, #tpu.memory_space<vmem>>, vector<8x32xf32>
    tpu.vector_store %arg15[%c48_54, %c0_55], %105 {strides = array<i32>} : memref<64x32xf32, #tpu.memory_space<vmem>>, vector<8x32xf32>,
    %c16 = arith.constant 16 : index
    %c0_56 = arith.constant 0 : index
    %107 = vector.load %arg14[%c16, %c0_56] : memref<64x256xbf16, #tpu.memory_space<vmem>>, vector<8x256xbf16>
    %c40 = arith.constant 40 : index
    %c0_57 = arith.constant 0 : index
    %108 = vector.load %arg14[%c40, %c0_57] : memref<64x256xbf16, #tpu.memory_space<vmem>>, vector<8x256xbf16>
    %109 = arith.select %13, %107, %108 : vector<8x256xi1>, vector<8x256xbf16>
    %110 = arith.extf %109 : vector<8x256xbf16> to vector<8x256xf32>
    %111 = arith.truncf %91 : vector<8x64xf32> to vector<8x64xbf16>
    %cst_58 = arith.constant dense<0.000000e+00> : vector<8x256xf32>
    %112 = tpu.matmul %111, %8, %cst_58 {dimension_numbers = #tpu.dot_dimension_numbers<[1], [0], [0], [1], [0, 0, 1, 1], [], []>} : vector<8x64xbf16>, vector<64x256xbf16>, vector<8x256xf32> -> vector<8x256xf32>
    %113 = arith.addf %110, %112 : vector<8x256xf32>
    %114 = vector.extract_strided_slice %113 {offsets = [0, 0], sizes = [8, 192], strides = [1, 1]} : vector<8x256xf32> to vector<8x192xf32>
    %115 = arith.negf %114 : vector<8x192xf32>
    %116 = math.exp %115 : vector<8x192xf32>
    %cst_59 = arith.constant 1.000000e+00 : f32
    %117 = vector.broadcast %cst_59 : f32 to vector<8x192xf32>
    %118 = arith.addf %117, %116 : vector<8x192xf32>
    %119 = arith.divf %117, %118 : vector<8x192xf32>
    %120 = vector.extract_strided_slice %113 {offsets = [0, 192], sizes = [8, 64], strides = [1, 1]} : vector<8x256xf32> to vector<8x64xf32>
    %121 = math.tanh %120 : vector<8x64xf32>
    %122 = vector.extract_strided_slice %119 {offsets = [0, 64], sizes = [8, 64], strides = [1, 1]} : vector<8x192xf32> to vector<8x64xf32>
    %123 = arith.mulf %122, %92 : vector<8x64xf32>
    %124 = vector.extract_strided_slice %119 {offsets = [0, 0], sizes = [8, 64], strides = [1, 1]} : vector<8x192xf32> to vector<8x64xf32>
    %125 = arith.mulf %124, %121 : vector<8x64xf32>
    %126 = arith.addf %123, %125 : vector<8x64xf32>
    %127 = vector.extract_strided_slice %119 {offsets = [0, 128], sizes = [8, 64], strides = [1, 1]} : vector<8x192xf32> to vector<8x64xf32>
    %128 = math.tanh %126 : vector<8x64xf32>
    %129 = arith.mulf %127, %128 : vector<8x64xf32>
    %c16_60 = arith.constant 16 : index
    %c0_61 = arith.constant 0 : index
    %130 = vector.load %arg1[%c16_60, %c0_61] : memref<64x64xf32, #tpu.memory_space<vmem>>, vector<8x64xf32>
    %c40_62 = arith.constant 40 : index
    %c0_63 = arith.constant 0 : index
    %131 = vector.load %arg1[%c40_62, %c0_63] : memref<64x64xf32, #tpu.memory_space<vmem>>, vector<8x64xf32>
    %132 = arith.select %14, %130, %131 : vector<8x64xi1>, vector<8x64xf32>
    %cst_64 = arith.constant 5.000000e-01 : f32
    %133 = vector.broadcast %cst_64 : f32 to vector<8x64xf32>
    %134 = arith.cmpf ogt, %132, %133 : vector<8x64xf32>
    %135 = arith.select %134, %129, %91 : vector<8x64xi1>, vector<8x64xf32>
    %136 = arith.select %134, %126, %92 : vector<8x64xi1>, vector<8x64xf32>
    %c16_65 = arith.constant 16 : index
    %c0_66 = arith.constant 0 : index
    %137 = vector.load %arg15[%c16_65, %c0_66] : memref<64x32xf32, #tpu.memory_space<vmem>>, vector<8x32xf32>
    %138 = vector.extract_strided_slice %134 {offsets = [0, 0], sizes = [8, 32], strides = [1, 1]} : vector<8x64xi1> to vector<8x32xi1>
    %139 = vector.extract_strided_slice %129 {offsets = [0, 0], sizes = [8, 32], strides = [1, 1]} : vector<8x64xf32> to vector<8x32xf32>
    %cst_67 = arith.constant 0.000000e+00 : f32
    %140 = vector.broadcast %cst_67 : f32 to vector<8x32xf32>
    %141 = arith.select %138, %139, %140 : vector<8x32xi1>, vector<8x32xf32>
    %142 = arith.addf %137, %141 : vector<8x32xf32>
    %c16_68 = arith.constant 16 : index
    %c0_69 = arith.constant 0 : index
    %143 = vector.load %arg15[%c16_68, %c0_69] : memref<64x32xf32, #tpu.memory_space<vmem>>, vector<8x32xf32>
    tpu.vector_store %arg15[%c16_68, %c0_69], %142 {strides = array<i32>} : memref<64x32xf32, #tpu.memory_space<vmem>>, vector<8x32xf32>,
    %c40_70 = arith.constant 40 : index
    %c0_71 = arith.constant 0 : index
    %144 = vector.load %arg15[%c40_70, %c0_71] : memref<64x32xf32, #tpu.memory_space<vmem>>, vector<8x32xf32>
    %145 = vector.extract_strided_slice %134 {offsets = [0, 32], sizes = [8, 32], strides = [1, 1]} : vector<8x64xi1> to vector<8x32xi1>
    %146 = vector.extract_strided_slice %129 {offsets = [0, 32], sizes = [8, 32], strides = [1, 1]} : vector<8x64xf32> to vector<8x32xf32>
    %cst_72 = arith.constant 0.000000e+00 : f32
    %147 = vector.broadcast %cst_72 : f32 to vector<8x32xf32>
    %148 = arith.select %145, %146, %147 : vector<8x32xi1>, vector<8x32xf32>
    %149 = arith.addf %144, %148 : vector<8x32xf32>
    %c40_73 = arith.constant 40 : index
    %c0_74 = arith.constant 0 : index
    %150 = vector.load %arg15[%c40_73, %c0_74] : memref<64x32xf32, #tpu.memory_space<vmem>>, vector<8x32xf32>
    tpu.vector_store %arg15[%c40_73, %c0_74], %149 {strides = array<i32>} : memref<64x32xf32, #tpu.memory_space<vmem>>, vector<8x32xf32>,
    %c24 = arith.constant 24 : index
    %c0_75 = arith.constant 0 : index
    %151 = vector.load %arg14[%c24, %c0_75] : memref<64x256xbf16, #tpu.memory_space<vmem>>, vector<8x256xbf16>
    %c32 = arith.constant 32 : index
    %c0_76 = arith.constant 0 : index
    %152 = vector.load %arg14[%c32, %c0_76] : memref<64x256xbf16, #tpu.memory_space<vmem>>, vector<8x256xbf16>
    %153 = arith.select %13, %151, %152 : vector<8x256xi1>, vector<8x256xbf16>
    %154 = arith.extf %153 : vector<8x256xbf16> to vector<8x256xf32>
    %155 = arith.truncf %135 : vector<8x64xf32> to vector<8x64xbf16>
    %cst_77 = arith.constant dense<0.000000e+00> : vector<8x256xf32>
    %156 = tpu.matmul %155, %8, %cst_77 {dimension_numbers = #tpu.dot_dimension_numbers<[1], [0], [0], [1], [0, 0, 1, 1], [], []>} : vector<8x64xbf16>, vector<64x256xbf16>, vector<8x256xf32> -> vector<8x256xf32>
    %157 = arith.addf %154, %156 : vector<8x256xf32>
    %158 = vector.extract_strided_slice %157 {offsets = [0, 0], sizes = [8, 192], strides = [1, 1]} : vector<8x256xf32> to vector<8x192xf32>
    %159 = arith.negf %158 : vector<8x192xf32>
    %160 = math.exp %159 : vector<8x192xf32>
    %cst_78 = arith.constant 1.000000e+00 : f32
    %161 = vector.broadcast %cst_78 : f32 to vector<8x192xf32>
    %162 = arith.addf %161, %160 : vector<8x192xf32>
    %163 = arith.divf %161, %162 : vector<8x192xf32>
    %164 = vector.extract_strided_slice %157 {offsets = [0, 192], sizes = [8, 64], strides = [1, 1]} : vector<8x256xf32> to vector<8x64xf32>
    %165 = math.tanh %164 : vector<8x64xf32>
    %166 = vector.extract_strided_slice %163 {offsets = [0, 64], sizes = [8, 64], strides = [1, 1]} : vector<8x192xf32> to vector<8x64xf32>
    %167 = arith.mulf %166, %136 : vector<8x64xf32>
    %168 = vector.extract_strided_slice %163 {offsets = [0, 0], sizes = [8, 64], strides = [1, 1]} : vector<8x192xf32> to vector<8x64xf32>
    %169 = arith.mulf %168, %165 : vector<8x64xf32>
    %170 = arith.addf %167, %169 : vector<8x64xf32>
    %171 = vector.extract_strided_slice %163 {offsets = [0, 128], sizes = [8, 64], strides = [1, 1]} : vector<8x192xf32> to vector<8x64xf32>
    %172 = math.tanh %170 : vector<8x64xf32>
    %173 = arith.mulf %171, %172 : vector<8x64xf32>
    %c24_79 = arith.constant 24 : index
    %c0_80 = arith.constant 0 : index
    %174 = vector.load %arg1[%c24_79, %c0_80] : memref<64x64xf32, #tpu.memory_space<vmem>>, vector<8x64xf32>
    %c32_81 = arith.constant 32 : index
    %c0_82 = arith.constant 0 : index
    %175 = vector.load %arg1[%c32_81, %c0_82] : memref<64x64xf32, #tpu.memory_space<vmem>>, vector<8x64xf32>
    %176 = arith.select %14, %174, %175 : vector<8x64xi1>, vector<8x64xf32>
    %cst_83 = arith.constant 5.000000e-01 : f32
    %177 = vector.broadcast %cst_83 : f32 to vector<8x64xf32>
    %178 = arith.cmpf ogt, %176, %177 : vector<8x64xf32>
    %179 = arith.select %178, %173, %135 : vector<8x64xi1>, vector<8x64xf32>
    %180 = arith.select %178, %170, %136 : vector<8x64xi1>, vector<8x64xf32>
    %c24_84 = arith.constant 24 : index
    %c0_85 = arith.constant 0 : index
    %181 = vector.load %arg15[%c24_84, %c0_85] : memref<64x32xf32, #tpu.memory_space<vmem>>, vector<8x32xf32>
    %182 = vector.extract_strided_slice %178 {offsets = [0, 0], sizes = [8, 32], strides = [1, 1]} : vector<8x64xi1> to vector<8x32xi1>
    %183 = vector.extract_strided_slice %173 {offsets = [0, 0], sizes = [8, 32], strides = [1, 1]} : vector<8x64xf32> to vector<8x32xf32>
    %cst_86 = arith.constant 0.000000e+00 : f32
    %184 = vector.broadcast %cst_86 : f32 to vector<8x32xf32>
    %185 = arith.select %182, %183, %184 : vector<8x32xi1>, vector<8x32xf32>
    %186 = arith.addf %181, %185 : vector<8x32xf32>
    %c24_87 = arith.constant 24 : index
    %c0_88 = arith.constant 0 : index
    %187 = vector.load %arg15[%c24_87, %c0_88] : memref<64x32xf32, #tpu.memory_space<vmem>>, vector<8x32xf32>
    tpu.vector_store %arg15[%c24_87, %c0_88], %186 {strides = array<i32>} : memref<64x32xf32, #tpu.memory_space<vmem>>, vector<8x32xf32>,
    %c32_89 = arith.constant 32 : index
    %c0_90 = arith.constant 0 : index
    %188 = vector.load %arg15[%c32_89, %c0_90] : memref<64x32xf32, #tpu.memory_space<vmem>>, vector<8x32xf32>
    %189 = vector.extract_strided_slice %178 {offsets = [0, 32], sizes = [8, 32], strides = [1, 1]} : vector<8x64xi1> to vector<8x32xi1>
    %190 = vector.extract_strided_slice %173 {offsets = [0, 32], sizes = [8, 32], strides = [1, 1]} : vector<8x64xf32> to vector<8x32xf32>
    %cst_91 = arith.constant 0.000000e+00 : f32
    %191 = vector.broadcast %cst_91 : f32 to vector<8x32xf32>
    %192 = arith.select %189, %190, %191 : vector<8x32xi1>, vector<8x32xf32>
    %193 = arith.addf %188, %192 : vector<8x32xf32>
    %c32_92 = arith.constant 32 : index
    %c0_93 = arith.constant 0 : index
    %194 = vector.load %arg15[%c32_92, %c0_93] : memref<64x32xf32, #tpu.memory_space<vmem>>, vector<8x32xf32>
    tpu.vector_store %arg15[%c32_92, %c0_93], %193 {strides = array<i32>} : memref<64x32xf32, #tpu.memory_space<vmem>>, vector<8x32xf32>,
    %c32_94 = arith.constant 32 : index
    %c0_95 = arith.constant 0 : index
    %195 = vector.load %arg14[%c32_94, %c0_95] : memref<64x256xbf16, #tpu.memory_space<vmem>>, vector<8x256xbf16>
    %c24_96 = arith.constant 24 : index
    %c0_97 = arith.constant 0 : index
    %196 = vector.load %arg14[%c24_96, %c0_97] : memref<64x256xbf16, #tpu.memory_space<vmem>>, vector<8x256xbf16>
    %197 = arith.select %13, %195, %196 : vector<8x256xi1>, vector<8x256xbf16>
    %198 = arith.extf %197 : vector<8x256xbf16> to vector<8x256xf32>
    %199 = arith.truncf %179 : vector<8x64xf32> to vector<8x64xbf16>
    %cst_98 = arith.constant dense<0.000000e+00> : vector<8x256xf32>
    %200 = tpu.matmul %199, %8, %cst_98 {dimension_numbers = #tpu.dot_dimension_numbers<[1], [0], [0], [1], [0, 0, 1, 1], [], []>} : vector<8x64xbf16>, vector<64x256xbf16>, vector<8x256xf32> -> vector<8x256xf32>
    %201 = arith.addf %198, %200 : vector<8x256xf32>
    %202 = vector.extract_strided_slice %201 {offsets = [0, 0], sizes = [8, 192], strides = [1, 1]} : vector<8x256xf32> to vector<8x192xf32>
    %203 = arith.negf %202 : vector<8x192xf32>
    %204 = math.exp %203 : vector<8x192xf32>
    %cst_99 = arith.constant 1.000000e+00 : f32
    %205 = vector.broadcast %cst_99 : f32 to vector<8x192xf32>
    %206 = arith.addf %205, %204 : vector<8x192xf32>
    %207 = arith.divf %205, %206 : vector<8x192xf32>
    %208 = vector.extract_strided_slice %201 {offsets = [0, 192], sizes = [8, 64], strides = [1, 1]} : vector<8x256xf32> to vector<8x64xf32>
    %209 = math.tanh %208 : vector<8x64xf32>
    %210 = vector.extract_strided_slice %207 {offsets = [0, 64], sizes = [8, 64], strides = [1, 1]} : vector<8x192xf32> to vector<8x64xf32>
    %211 = arith.mulf %210, %180 : vector<8x64xf32>
    %212 = vector.extract_strided_slice %207 {offsets = [0, 0], sizes = [8, 64], strides = [1, 1]} : vector<8x192xf32> to vector<8x64xf32>
    %213 = arith.mulf %212, %209 : vector<8x64xf32>
    %214 = arith.addf %211, %213 : vector<8x64xf32>
    %215 = vector.extract_strided_slice %207 {offsets = [0, 128], sizes = [8, 64], strides = [1, 1]} : vector<8x192xf32> to vector<8x64xf32>
    %216 = math.tanh %214 : vector<8x64xf32>
    %217 = arith.mulf %215, %216 : vector<8x64xf32>
    %c32_100 = arith.constant 32 : index
    %c0_101 = arith.constant 0 : index
    %218 = vector.load %arg1[%c32_100, %c0_101] : memref<64x64xf32, #tpu.memory_space<vmem>>, vector<8x64xf32>
    %c24_102 = arith.constant 24 : index
    %c0_103 = arith.constant 0 : index
    %219 = vector.load %arg1[%c24_102, %c0_103] : memref<64x64xf32, #tpu.memory_space<vmem>>, vector<8x64xf32>
    %220 = arith.select %14, %218, %219 : vector<8x64xi1>, vector<8x64xf32>
    %cst_104 = arith.constant 5.000000e-01 : f32
    %221 = vector.broadcast %cst_104 : f32 to vector<8x64xf32>
    %222 = arith.cmpf ogt, %220, %221 : vector<8x64xf32>
    %223 = arith.select %222, %217, %179 : vector<8x64xi1>, vector<8x64xf32>
    %224 = arith.select %222, %214, %180 : vector<8x64xi1>, vector<8x64xf32>
    %c32_105 = arith.constant 32 : index
    %c0_106 = arith.constant 0 : index
    %225 = vector.load %arg15[%c32_105, %c0_106] : memref<64x32xf32, #tpu.memory_space<vmem>>, vector<8x32xf32>
    %226 = vector.extract_strided_slice %222 {offsets = [0, 0], sizes = [8, 32], strides = [1, 1]} : vector<8x64xi1> to vector<8x32xi1>
    %227 = vector.extract_strided_slice %217 {offsets = [0, 0], sizes = [8, 32], strides = [1, 1]} : vector<8x64xf32> to vector<8x32xf32>
    %cst_107 = arith.constant 0.000000e+00 : f32
    %228 = vector.broadcast %cst_107 : f32 to vector<8x32xf32>
    %229 = arith.select %226, %227, %228 : vector<8x32xi1>, vector<8x32xf32>
    %230 = arith.addf %225, %229 : vector<8x32xf32>
    %c32_108 = arith.constant 32 : index
    %c0_109 = arith.constant 0 : index
    %231 = vector.load %arg15[%c32_108, %c0_109] : memref<64x32xf32, #tpu.memory_space<vmem>>, vector<8x32xf32>
    tpu.vector_store %arg15[%c32_108, %c0_109], %230 {strides = array<i32>} : memref<64x32xf32, #tpu.memory_space<vmem>>, vector<8x32xf32>,
    %c24_110 = arith.constant 24 : index
    %c0_111 = arith.constant 0 : index
    %232 = vector.load %arg15[%c24_110, %c0_111] : memref<64x32xf32, #tpu.memory_space<vmem>>, vector<8x32xf32>
    %233 = vector.extract_strided_slice %222 {offsets = [0, 32], sizes = [8, 32], strides = [1, 1]} : vector<8x64xi1> to vector<8x32xi1>
    %234 = vector.extract_strided_slice %217 {offsets = [0, 32], sizes = [8, 32], strides = [1, 1]} : vector<8x64xf32> to vector<8x32xf32>
    %cst_112 = arith.constant 0.000000e+00 : f32
    %235 = vector.broadcast %cst_112 : f32 to vector<8x32xf32>
    %236 = arith.select %233, %234, %235 : vector<8x32xi1>, vector<8x32xf32>
    %237 = arith.addf %232, %236 : vector<8x32xf32>
    %c24_113 = arith.constant 24 : index
    %c0_114 = arith.constant 0 : index
    %238 = vector.load %arg15[%c24_113, %c0_114] : memref<64x32xf32, #tpu.memory_space<vmem>>, vector<8x32xf32>
    tpu.vector_store %arg15[%c24_113, %c0_114], %237 {strides = array<i32>} : memref<64x32xf32, #tpu.memory_space<vmem>>, vector<8x32xf32>,
    %c40_115 = arith.constant 40 : index
    %c0_116 = arith.constant 0 : index
    %239 = vector.load %arg14[%c40_115, %c0_116] : memref<64x256xbf16, #tpu.memory_space<vmem>>, vector<8x256xbf16>
    %c16_117 = arith.constant 16 : index
    %c0_118 = arith.constant 0 : index
    %240 = vector.load %arg14[%c16_117, %c0_118] : memref<64x256xbf16, #tpu.memory_space<vmem>>, vector<8x256xbf16>
    %241 = arith.select %13, %239, %240 : vector<8x256xi1>, vector<8x256xbf16>
    %242 = arith.extf %241 : vector<8x256xbf16> to vector<8x256xf32>
    %243 = arith.truncf %223 : vector<8x64xf32> to vector<8x64xbf16>
    %cst_119 = arith.constant dense<0.000000e+00> : vector<8x256xf32>
    %244 = tpu.matmul %243, %8, %cst_119 {dimension_numbers = #tpu.dot_dimension_numbers<[1], [0], [0], [1], [0, 0, 1, 1], [], []>} : vector<8x64xbf16>, vector<64x256xbf16>, vector<8x256xf32> -> vector<8x256xf32>
    %245 = arith.addf %242, %244 : vector<8x256xf32>
    %246 = vector.extract_strided_slice %245 {offsets = [0, 0], sizes = [8, 192], strides = [1, 1]} : vector<8x256xf32> to vector<8x192xf32>
    %247 = arith.negf %246 : vector<8x192xf32>
    %248 = math.exp %247 : vector<8x192xf32>
    %cst_120 = arith.constant 1.000000e+00 : f32
    %249 = vector.broadcast %cst_120 : f32 to vector<8x192xf32>
    %250 = arith.addf %249, %248 : vector<8x192xf32>
    %251 = arith.divf %249, %250 : vector<8x192xf32>
    %252 = vector.extract_strided_slice %245 {offsets = [0, 192], sizes = [8, 64], strides = [1, 1]} : vector<8x256xf32> to vector<8x64xf32>
    %253 = math.tanh %252 : vector<8x64xf32>
    %254 = vector.extract_strided_slice %251 {offsets = [0, 64], sizes = [8, 64], strides = [1, 1]} : vector<8x192xf32> to vector<8x64xf32>
    %255 = arith.mulf %254, %224 : vector<8x64xf32>
    %256 = vector.extract_strided_slice %251 {offsets = [0, 0], sizes = [8, 64], strides = [1, 1]} : vector<8x192xf32> to vector<8x64xf32>
    %257 = arith.mulf %256, %253 : vector<8x64xf32>
    %258 = arith.addf %255, %257 : vector<8x64xf32>
    %259 = vector.extract_strided_slice %251 {offsets = [0, 128], sizes = [8, 64], strides = [1, 1]} : vector<8x192xf32> to vector<8x64xf32>
    %260 = math.tanh %258 : vector<8x64xf32>
    %261 = arith.mulf %259, %260 : vector<8x64xf32>
    %c40_121 = arith.constant 40 : index
    %c0_122 = arith.constant 0 : index
    %262 = vector.load %arg1[%c40_121, %c0_122] : memref<64x64xf32, #tpu.memory_space<vmem>>, vector<8x64xf32>
    %c16_123 = arith.constant 16 : index
    %c0_124 = arith.constant 0 : index
    %263 = vector.load %arg1[%c16_123, %c0_124] : memref<64x64xf32, #tpu.memory_space<vmem>>, vector<8x64xf32>
    %264 = arith.select %14, %262, %263 : vector<8x64xi1>, vector<8x64xf32>
    %cst_125 = arith.constant 5.000000e-01 : f32
    %265 = vector.broadcast %cst_125 : f32 to vector<8x64xf32>
    %266 = arith.cmpf ogt, %264, %265 : vector<8x64xf32>
    %267 = arith.select %266, %261, %223 : vector<8x64xi1>, vector<8x64xf32>
    %268 = arith.select %266, %258, %224 : vector<8x64xi1>, vector<8x64xf32>
    %c40_126 = arith.constant 40 : index
    %c0_127 = arith.constant 0 : index
    %269 = vector.load %arg15[%c40_126, %c0_127] : memref<64x32xf32, #tpu.memory_space<vmem>>, vector<8x32xf32>
    %270 = vector.extract_strided_slice %266 {offsets = [0, 0], sizes = [8, 32], strides = [1, 1]} : vector<8x64xi1> to vector<8x32xi1>
    %271 = vector.extract_strided_slice %261 {offsets = [0, 0], sizes = [8, 32], strides = [1, 1]} : vector<8x64xf32> to vector<8x32xf32>
    %cst_128 = arith.constant 0.000000e+00 : f32
    %272 = vector.broadcast %cst_128 : f32 to vector<8x32xf32>
    %273 = arith.select %270, %271, %272 : vector<8x32xi1>, vector<8x32xf32>
    %274 = arith.addf %269, %273 : vector<8x32xf32>
    %c40_129 = arith.constant 40 : index
    %c0_130 = arith.constant 0 : index
    %275 = vector.load %arg15[%c40_129, %c0_130] : memref<64x32xf32, #tpu.memory_space<vmem>>, vector<8x32xf32>
    tpu.vector_store %arg15[%c40_129, %c0_130], %274 {strides = array<i32>} : memref<64x32xf32, #tpu.memory_space<vmem>>, vector<8x32xf32>,
    %c16_131 = arith.constant 16 : index
    %c0_132 = arith.constant 0 : index
    %276 = vector.load %arg15[%c16_131, %c0_132] : memref<64x32xf32, #tpu.memory_space<vmem>>, vector<8x32xf32>
    %277 = vector.extract_strided_slice %266 {offsets = [0, 32], sizes = [8, 32], strides = [1, 1]} : vector<8x64xi1> to vector<8x32xi1>
    %278 = vector.extract_strided_slice %261 {offsets = [0, 32], sizes = [8, 32], strides = [1, 1]} : vector<8x64xf32> to vector<8x32xf32>
    %cst_133 = arith.constant 0.000000e+00 : f32
    %279 = vector.broadcast %cst_133 : f32 to vector<8x32xf32>
    %280 = arith.select %277, %278, %279 : vector<8x32xi1>, vector<8x32xf32>
    %281 = arith.addf %276, %280 : vector<8x32xf32>
    %c16_134 = arith.constant 16 : index
    %c0_135 = arith.constant 0 : index
    %282 = vector.load %arg15[%c16_134, %c0_135] : memref<64x32xf32, #tpu.memory_space<vmem>>, vector<8x32xf32>
    tpu.vector_store %arg15[%c16_134, %c0_135], %281 {strides = array<i32>} : memref<64x32xf32, #tpu.memory_space<vmem>>, vector<8x32xf32>,
    %c48_136 = arith.constant 48 : index
    %c0_137 = arith.constant 0 : index
    %283 = vector.load %arg14[%c48_136, %c0_137] : memref<64x256xbf16, #tpu.memory_space<vmem>>, vector<8x256xbf16>
    %c8_138 = arith.constant 8 : index
    %c0_139 = arith.constant 0 : index
    %284 = vector.load %arg14[%c8_138, %c0_139] : memref<64x256xbf16, #tpu.memory_space<vmem>>, vector<8x256xbf16>
    %285 = arith.select %13, %283, %284 : vector<8x256xi1>, vector<8x256xbf16>
    %286 = arith.extf %285 : vector<8x256xbf16> to vector<8x256xf32>
    %287 = arith.truncf %267 : vector<8x64xf32> to vector<8x64xbf16>
    %cst_140 = arith.constant dense<0.000000e+00> : vector<8x256xf32>
    %288 = tpu.matmul %287, %8, %cst_140 {dimension_numbers = #tpu.dot_dimension_numbers<[1], [0], [0], [1], [0, 0, 1, 1], [], []>} : vector<8x64xbf16>, vector<64x256xbf16>, vector<8x256xf32> -> vector<8x256xf32>
    %289 = arith.addf %286, %288 : vector<8x256xf32>
    %290 = vector.extract_strided_slice %289 {offsets = [0, 0], sizes = [8, 192], strides = [1, 1]} : vector<8x256xf32> to vector<8x192xf32>
    %291 = arith.negf %290 : vector<8x192xf32>
    %292 = math.exp %291 : vector<8x192xf32>
    %cst_141 = arith.constant 1.000000e+00 : f32
    %293 = vector.broadcast %cst_141 : f32 to vector<8x192xf32>
    %294 = arith.addf %293, %292 : vector<8x192xf32>
    %295 = arith.divf %293, %294 : vector<8x192xf32>
    %296 = vector.extract_strided_slice %289 {offsets = [0, 192], sizes = [8, 64], strides = [1, 1]} : vector<8x256xf32> to vector<8x64xf32>
    %297 = math.tanh %296 : vector<8x64xf32>
    %298 = vector.extract_strided_slice %295 {offsets = [0, 64], sizes = [8, 64], strides = [1, 1]} : vector<8x192xf32> to vector<8x64xf32>
    %299 = arith.mulf %298, %268 : vector<8x64xf32>
    %300 = vector.extract_strided_slice %295 {offsets = [0, 0], sizes = [8, 64], strides = [1, 1]} : vector<8x192xf32> to vector<8x64xf32>
    %301 = arith.mulf %300, %297 : vector<8x64xf32>
    %302 = arith.addf %299, %301 : vector<8x64xf32>
    %303 = vector.extract_strided_slice %295 {offsets = [0, 128], sizes = [8, 64], strides = [1, 1]} : vector<8x192xf32> to vector<8x64xf32>
    %304 = math.tanh %302 : vector<8x64xf32>
    %305 = arith.mulf %303, %304 : vector<8x64xf32>
    %c48_142 = arith.constant 48 : index
    %c0_143 = arith.constant 0 : index
    %306 = vector.load %arg1[%c48_142, %c0_143] : memref<64x64xf32, #tpu.memory_space<vmem>>, vector<8x64xf32>
    %c8_144 = arith.constant 8 : index
    %c0_145 = arith.constant 0 : index
    %307 = vector.load %arg1[%c8_144, %c0_145] : memref<64x64xf32, #tpu.memory_space<vmem>>, vector<8x64xf32>
    %308 = arith.select %14, %306, %307 : vector<8x64xi1>, vector<8x64xf32>
    %cst_146 = arith.constant 5.000000e-01 : f32
    %309 = vector.broadcast %cst_146 : f32 to vector<8x64xf32>
    %310 = arith.cmpf ogt, %308, %309 : vector<8x64xf32>
    %311 = arith.select %310, %305, %267 : vector<8x64xi1>, vector<8x64xf32>
    %312 = arith.select %310, %302, %268 : vector<8x64xi1>, vector<8x64xf32>
    %c48_147 = arith.constant 48 : index
    %c0_148 = arith.constant 0 : index
    %313 = vector.load %arg15[%c48_147, %c0_148] : memref<64x32xf32, #tpu.memory_space<vmem>>, vector<8x32xf32>
    %314 = vector.extract_strided_slice %310 {offsets = [0, 0], sizes = [8, 32], strides = [1, 1]} : vector<8x64xi1> to vector<8x32xi1>
    %315 = vector.extract_strided_slice %305 {offsets = [0, 0], sizes = [8, 32], strides = [1, 1]} : vector<8x64xf32> to vector<8x32xf32>
    %cst_149 = arith.constant 0.000000e+00 : f32
    %316 = vector.broadcast %cst_149 : f32 to vector<8x32xf32>
    %317 = arith.select %314, %315, %316 : vector<8x32xi1>, vector<8x32xf32>
    %318 = arith.addf %313, %317 : vector<8x32xf32>
    %c48_150 = arith.constant 48 : index
    %c0_151 = arith.constant 0 : index
    %319 = vector.load %arg15[%c48_150, %c0_151] : memref<64x32xf32, #tpu.memory_space<vmem>>, vector<8x32xf32>
    tpu.vector_store %arg15[%c48_150, %c0_151], %318 {strides = array<i32>} : memref<64x32xf32, #tpu.memory_space<vmem>>, vector<8x32xf32>,
    %c8_152 = arith.constant 8 : index
    %c0_153 = arith.constant 0 : index
    %320 = vector.load %arg15[%c8_152, %c0_153] : memref<64x32xf32, #tpu.memory_space<vmem>>, vector<8x32xf32>
    %321 = vector.extract_strided_slice %310 {offsets = [0, 32], sizes = [8, 32], strides = [1, 1]} : vector<8x64xi1> to vector<8x32xi1>
    %322 = vector.extract_strided_slice %305 {offsets = [0, 32], sizes = [8, 32], strides = [1, 1]} : vector<8x64xf32> to vector<8x32xf32>
    %cst_154 = arith.constant 0.000000e+00 : f32
    %323 = vector.broadcast %cst_154 : f32 to vector<8x32xf32>
    %324 = arith.select %321, %322, %323 : vector<8x32xi1>, vector<8x32xf32>
    %325 = arith.addf %320, %324 : vector<8x32xf32>
    %c8_155 = arith.constant 8 : index
    %c0_156 = arith.constant 0 : index
    %326 = vector.load %arg15[%c8_155, %c0_156] : memref<64x32xf32, #tpu.memory_space<vmem>>, vector<8x32xf32>
    tpu.vector_store %arg15[%c8_155, %c0_156], %325 {strides = array<i32>} : memref<64x32xf32, #tpu.memory_space<vmem>>, vector<8x32xf32>,
    %c56_157 = arith.constant 56 : index
    %c0_158 = arith.constant 0 : index
    %327 = vector.load %arg14[%c56_157, %c0_158] : memref<64x256xbf16, #tpu.memory_space<vmem>>, vector<8x256xbf16>
    %c0_159 = arith.constant 0 : index
    %c0_160 = arith.constant 0 : index
    %328 = vector.load %arg14[%c0_159, %c0_160] : memref<64x256xbf16, #tpu.memory_space<vmem>>, vector<8x256xbf16>
    %329 = arith.select %13, %327, %328 : vector<8x256xi1>, vector<8x256xbf16>
    %330 = arith.extf %329 : vector<8x256xbf16> to vector<8x256xf32>
    %331 = arith.truncf %311 : vector<8x64xf32> to vector<8x64xbf16>
    %cst_161 = arith.constant dense<0.000000e+00> : vector<8x256xf32>
    %332 = tpu.matmul %331, %8, %cst_161 {dimension_numbers = #tpu.dot_dimension_numbers<[1], [0], [0], [1], [0, 0, 1, 1], [], []>} : vector<8x64xbf16>, vector<64x256xbf16>, vector<8x256xf32> -> vector<8x256xf32>
    %333 = arith.addf %330, %332 : vector<8x256xf32>
    %334 = vector.extract_strided_slice %333 {offsets = [0, 0], sizes = [8, 192], strides = [1, 1]} : vector<8x256xf32> to vector<8x192xf32>
    %335 = arith.negf %334 : vector<8x192xf32>
    %336 = math.exp %335 : vector<8x192xf32>
    %cst_162 = arith.constant 1.000000e+00 : f32
    %337 = vector.broadcast %cst_162 : f32 to vector<8x192xf32>
    %338 = arith.addf %337, %336 : vector<8x192xf32>
    %339 = arith.divf %337, %338 : vector<8x192xf32>
    %340 = vector.extract_strided_slice %333 {offsets = [0, 192], sizes = [8, 64], strides = [1, 1]} : vector<8x256xf32> to vector<8x64xf32>
    %341 = math.tanh %340 : vector<8x64xf32>
    %342 = vector.extract_strided_slice %339 {offsets = [0, 64], sizes = [8, 64], strides = [1, 1]} : vector<8x192xf32> to vector<8x64xf32>
    %343 = arith.mulf %342, %312 : vector<8x64xf32>
    %344 = vector.extract_strided_slice %339 {offsets = [0, 0], sizes = [8, 64], strides = [1, 1]} : vector<8x192xf32> to vector<8x64xf32>
    %345 = arith.mulf %344, %341 : vector<8x64xf32>
    %346 = arith.addf %343, %345 : vector<8x64xf32>
    %347 = vector.extract_strided_slice %339 {offsets = [0, 128], sizes = [8, 64], strides = [1, 1]} : vector<8x192xf32> to vector<8x64xf32>
    %348 = math.tanh %346 : vector<8x64xf32>
    %349 = arith.mulf %347, %348 : vector<8x64xf32>
    %c56_163 = arith.constant 56 : index
    %c0_164 = arith.constant 0 : index
    %350 = vector.load %arg1[%c56_163, %c0_164] : memref<64x64xf32, #tpu.memory_space<vmem>>, vector<8x64xf32>
    %c0_165 = arith.constant 0 : index
    %c0_166 = arith.constant 0 : index
    %351 = vector.load %arg1[%c0_165, %c0_166] : memref<64x64xf32, #tpu.memory_space<vmem>>, vector<8x64xf32>
    %352 = arith.select %14, %350, %351 : vector<8x64xi1>, vector<8x64xf32>
    %cst_167 = arith.constant 5.000000e-01 : f32
    %353 = vector.broadcast %cst_167 : f32 to vector<8x64xf32>
    %354 = arith.cmpf ogt, %352, %353 : vector<8x64xf32>
    %c56_168 = arith.constant 56 : index
    %c0_169 = arith.constant 0 : index
    %355 = vector.load %arg15[%c56_168, %c0_169] : memref<64x32xf32, #tpu.memory_space<vmem>>, vector<8x32xf32>
    %356 = vector.extract_strided_slice %354 {offsets = [0, 0], sizes = [8, 32], strides = [1, 1]} : vector<8x64xi1> to vector<8x32xi1>
    %357 = vector.extract_strided_slice %349 {offsets = [0, 0], sizes = [8, 32], strides = [1, 1]} : vector<8x64xf32> to vector<8x32xf32>
    %cst_170 = arith.constant 0.000000e+00 : f32
    %358 = vector.broadcast %cst_170 : f32 to vector<8x32xf32>
    %359 = arith.select %356, %357, %358 : vector<8x32xi1>, vector<8x32xf32>
    %360 = arith.addf %355, %359 : vector<8x32xf32>
    %c56_171 = arith.constant 56 : index
    %c0_172 = arith.constant 0 : index
    %361 = vector.load %arg15[%c56_171, %c0_172] : memref<64x32xf32, #tpu.memory_space<vmem>>, vector<8x32xf32>
    tpu.vector_store %arg15[%c56_171, %c0_172], %360 {strides = array<i32>} : memref<64x32xf32, #tpu.memory_space<vmem>>, vector<8x32xf32>,
    %c0_173 = arith.constant 0 : index
    %c0_174 = arith.constant 0 : index
    %362 = vector.load %arg15[%c0_173, %c0_174] : memref<64x32xf32, #tpu.memory_space<vmem>>, vector<8x32xf32>
    %363 = vector.extract_strided_slice %354 {offsets = [0, 32], sizes = [8, 32], strides = [1, 1]} : vector<8x64xi1> to vector<8x32xi1>
    %364 = vector.extract_strided_slice %349 {offsets = [0, 32], sizes = [8, 32], strides = [1, 1]} : vector<8x64xf32> to vector<8x32xf32>
    %cst_175 = arith.constant 0.000000e+00 : f32
    %365 = vector.broadcast %cst_175 : f32 to vector<8x32xf32>
    %366 = arith.select %363, %364, %365 : vector<8x32xi1>, vector<8x32xf32>
    %367 = arith.addf %362, %366 : vector<8x32xf32>
    %c0_176 = arith.constant 0 : index
    %c0_177 = arith.constant 0 : index
    %368 = vector.load %arg15[%c0_176, %c0_177] : memref<64x32xf32, #tpu.memory_space<vmem>>, vector<8x32xf32>
    tpu.vector_store %arg15[%c0_176, %c0_177], %367 {strides = array<i32>} : memref<64x32xf32, #tpu.memory_space<vmem>>, vector<8x32xf32>,
    %c0_178 = arith.constant 0 : index
    %c0_179 = arith.constant 0 : index
    %369 = vector.load %arg15[%c0_178, %c0_179] : memref<64x32xf32, #tpu.memory_space<vmem>>, vector<64x32xf32>
    %370 = arith.truncf %369 : vector<64x32xf32> to vector<64x32xbf16>
    %c0_180 = arith.constant 0 : index
    %c0_181 = arith.constant 0 : index
    %371 = vector.load %arg6[%c0_180, %c0_181] : memref<32x64xbf16, #tpu.memory_space<vmem>>, vector<32x64xbf16>
    %cst_182 = arith.constant dense<0.000000e+00> : vector<64x64xf32>
    %372 = tpu.matmul %370, %371, %cst_182 {dimension_numbers = #tpu.dot_dimension_numbers<[1], [0], [0], [1], [0, 0, 1, 1], [], []>} : vector<64x32xbf16>, vector<32x64xbf16>, vector<64x64xf32> -> vector<64x64xf32>
    %c0_183 = arith.constant 0 : index
    %c0_184 = arith.constant 0 : index
    %373 = vector.load %arg7[%c0_183, %c0_184] : memref<1x64xf32, #tpu.memory_space<vmem>>, vector<1x64xf32>
    %374 = vector.broadcast %373 : vector<1x64xf32> to vector<64x64xf32>
    %375 = arith.addf %372, %374 : vector<64x64xf32>
    %cst_185 = arith.constant 0.000000e+00 : f32
    %376 = vector.broadcast %cst_185 : f32 to vector<64x64xf32>
    %377 = arith.maximumf %375, %376 : vector<64x64xf32>
    %378 = arith.truncf %377 : vector<64x64xf32> to vector<64x64xbf16>
    %c0_186 = arith.constant 0 : index
    %c0_187 = arith.constant 0 : index
    %379 = vector.load %arg8[%c0_186, %c0_187] : memref<64x32xbf16, #tpu.memory_space<vmem>>, vector<64x32xbf16>
    %cst_188 = arith.constant dense<0.000000e+00> : vector<64x32xf32>
    %380 = tpu.matmul %378, %379, %cst_188 {dimension_numbers = #tpu.dot_dimension_numbers<[1], [0], [0], [1], [0, 0, 1, 1], [], []>} : vector<64x64xbf16>, vector<64x32xbf16>, vector<64x32xf32> -> vector<64x32xf32>
    %381 = tpu.iota {dimensions = array<i32: 1>} : vector<8x8xi32>
    %cst_189 = arith.constant 0.000000e+00 : f32
    %382 = vector.broadcast %cst_189 : f32 to vector<8x8xf32>
    %c0_i32 = arith.constant 0 : i32
    %383 = vector.broadcast %c0_i32 : i32 to vector<8x8xi32>
    %384 = arith.cmpi eq, %381, %383 : vector<8x8xi32>
    %385 = vector.extract_strided_slice %380 {offsets = [0, 0], sizes = [8, 8], strides = [1, 1]} : vector<64x32xf32> to vector<8x8xf32>
    %cst_190 = arith.constant 0.000000e+00 : f32
    %386 = vector.broadcast %cst_190 : f32 to vector<8x8xf32>
    %387 = arith.select %384, %385, %386 : vector<8x8xi1>, vector<8x8xf32>
    %388 = arith.addf %382, %387 : vector<8x8xf32>
    %c1_i32 = arith.constant 1 : i32
    %389 = vector.broadcast %c1_i32 : i32 to vector<8x8xi32>
    %390 = arith.cmpi eq, %381, %389 : vector<8x8xi32>
    %391 = vector.extract_strided_slice %380 {offsets = [8, 0], sizes = [8, 8], strides = [1, 1]} : vector<64x32xf32> to vector<8x8xf32>
    %cst_191 = arith.constant 0.000000e+00 : f32
    %392 = vector.broadcast %cst_191 : f32 to vector<8x8xf32>
    %393 = arith.select %390, %391, %392 : vector<8x8xi1>, vector<8x8xf32>
    %394 = arith.addf %388, %393 : vector<8x8xf32>
    %c2_i32 = arith.constant 2 : i32
    %395 = vector.broadcast %c2_i32 : i32 to vector<8x8xi32>
    %396 = arith.cmpi eq, %381, %395 : vector<8x8xi32>
    %397 = vector.extract_strided_slice %380 {offsets = [16, 0], sizes = [8, 8], strides = [1, 1]} : vector<64x32xf32> to vector<8x8xf32>
    %cst_192 = arith.constant 0.000000e+00 : f32
    %398 = vector.broadcast %cst_192 : f32 to vector<8x8xf32>
    %399 = arith.select %396, %397, %398 : vector<8x8xi1>, vector<8x8xf32>
    %400 = arith.addf %394, %399 : vector<8x8xf32>
    %c3_i32 = arith.constant 3 : i32
    %401 = vector.broadcast %c3_i32 : i32 to vector<8x8xi32>
    %402 = arith.cmpi eq, %381, %401 : vector<8x8xi32>
    %403 = vector.extract_strided_slice %380 {offsets = [24, 0], sizes = [8, 8], strides = [1, 1]} : vector<64x32xf32> to vector<8x8xf32>
    %cst_193 = arith.constant 0.000000e+00 : f32
    %404 = vector.broadcast %cst_193 : f32 to vector<8x8xf32>
    %405 = arith.select %402, %403, %404 : vector<8x8xi1>, vector<8x8xf32>
    %406 = arith.addf %400, %405 : vector<8x8xf32>
    %c4_i32 = arith.constant 4 : i32
    %407 = vector.broadcast %c4_i32 : i32 to vector<8x8xi32>
    %408 = arith.cmpi eq, %381, %407 : vector<8x8xi32>
    %409 = vector.extract_strided_slice %380 {offsets = [32, 0], sizes = [8, 8], strides = [1, 1]} : vector<64x32xf32> to vector<8x8xf32>
    %cst_194 = arith.constant 0.000000e+00 : f32
    %410 = vector.broadcast %cst_194 : f32 to vector<8x8xf32>
    %411 = arith.select %408, %409, %410 : vector<8x8xi1>, vector<8x8xf32>
    %412 = arith.addf %406, %411 : vector<8x8xf32>
    %c5_i32 = arith.constant 5 : i32
    %413 = vector.broadcast %c5_i32 : i32 to vector<8x8xi32>
    %414 = arith.cmpi eq, %381, %413 : vector<8x8xi32>
    %415 = vector.extract_strided_slice %380 {offsets = [40, 0], sizes = [8, 8], strides = [1, 1]} : vector<64x32xf32> to vector<8x8xf32>
    %cst_195 = arith.constant 0.000000e+00 : f32
    %416 = vector.broadcast %cst_195 : f32 to vector<8x8xf32>
    %417 = arith.select %414, %415, %416 : vector<8x8xi1>, vector<8x8xf32>
    %418 = arith.addf %412, %417 : vector<8x8xf32>
    %c6_i32 = arith.constant 6 : i32
    %419 = vector.broadcast %c6_i32 : i32 to vector<8x8xi32>
    %420 = arith.cmpi eq, %381, %419 : vector<8x8xi32>
    %421 = vector.extract_strided_slice %380 {offsets = [48, 0], sizes = [8, 8], strides = [1, 1]} : vector<64x32xf32> to vector<8x8xf32>
    %cst_196 = arith.constant 0.000000e+00 : f32
    %422 = vector.broadcast %cst_196 : f32 to vector<8x8xf32>
    %423 = arith.select %420, %421, %422 : vector<8x8xi1>, vector<8x8xf32>
    %424 = arith.addf %418, %423 : vector<8x8xf32>
    %c7_i32 = arith.constant 7 : i32
    %425 = vector.broadcast %c7_i32 : i32 to vector<8x8xi32>
    %426 = arith.cmpi eq, %381, %425 : vector<8x8xi32>
    %427 = vector.extract_strided_slice %380 {offsets = [56, 0], sizes = [8, 8], strides = [1, 1]} : vector<64x32xf32> to vector<8x8xf32>
    %cst_197 = arith.constant 0.000000e+00 : f32
    %428 = vector.broadcast %cst_197 : f32 to vector<8x8xf32>
    %429 = arith.select %426, %427, %428 : vector<8x8xi1>, vector<8x8xf32>
    %430 = arith.addf %424, %429 : vector<8x8xf32>
    %c0_198 = arith.constant 0 : index
    %c0_199 = arith.constant 0 : index
    %431 = vector.load %arg9[%c0_198, %c0_199] : memref<1x1xf32, #tpu.memory_space<vmem>>, vector<1x1xf32>
    %432 = vector.broadcast %431 : vector<1x1xf32> to vector<8x8xf32>
    %433 = arith.addf %430, %432 : vector<8x8xf32>
    %cst_200 = arith.constant dense<0xFF800000> : vector<8xf32>
    %434 = vector.multi_reduction <maximumf>, %433, %cst_200 [1] : vector<8x8xf32> to vector<8xf32>
    %435 = vector.shape_cast %434 : vector<8xf32> to vector<8x1xf32>
    %436 = vector.broadcast %435 : vector<8x1xf32> to vector<8x8xf32>
    %437 = arith.subf %433, %436 : vector<8x8xf32>
    %438 = math.exp %437 : vector<8x8xf32>
    %cst_201 = arith.constant dense<0.000000e+00> : vector<8xf32>
    %439 = vector.multi_reduction <add>, %438, %cst_201 [1] : vector<8x8xf32> to vector<8xf32>
    %440 = vector.shape_cast %439 : vector<8xf32> to vector<8x1xf32>
    %441 = tpu.reciprocal %440 : vector<8x1xf32> -> vector<8x1xf32>
    %442 = vector.broadcast %441 : vector<8x1xf32> to vector<8x8xf32>
    %443 = arith.mulf %438, %442 : vector<8x8xf32>
    %c0_202 = arith.constant 0 : index
    %c0_203 = arith.constant 0 : index
    %444 = vector.load %arg13[%c0_202, %c0_203] : memref<8x8xf32, #tpu.memory_space<vmem>>, vector<8x8xf32>
    tpu.vector_store %arg13[%c0_202, %c0_203], %443 {strides = array<i32>} : memref<8x8xf32, #tpu.memory_space<vmem>>, vector<8x8xf32>,
    %c0_204 = arith.constant 0 : index
    %c0_205 = arith.constant 0 : index
    %445 = vector.load %arg9[%c0_204, %c0_205] : memref<1x1xf32, #tpu.memory_space<vmem>>, vector<1x1xf32>
    %446 = vector.broadcast %445 : vector<1x1xf32> to vector<8x1xf32>
    %447 = arith.subf %446, %435 : vector<8x1xf32>
    %448 = vector.shape_cast %447 : vector<8x1xf32> to vector<8x1xf32>
    %449 = vector.broadcast %448 : vector<8x1xf32> to vector<8x32xf32>
    %cst_206 = arith.constant 0.000000e+00 : f32
    %450 = vector.broadcast %cst_206 : f32 to vector<8x32xf32>
    %451 = vector.extract_strided_slice %369 {offsets = [0, 0], sizes = [8, 32], strides = [1, 1]} : vector<64x32xf32> to vector<8x32xf32>
    %452 = vector.extract_strided_slice %380 {offsets = [0, 0], sizes = [8, 32], strides = [1, 1]} : vector<64x32xf32> to vector<8x32xf32>
    %453 = arith.addf %452, %449 : vector<8x32xf32>
    %454 = math.exp %453 : vector<8x32xf32>
    %455 = arith.mulf %451, %454 : vector<8x32xf32>
    %456 = arith.addf %450, %455 : vector<8x32xf32>
    %457 = vector.extract_strided_slice %369 {offsets = [8, 0], sizes = [8, 32], strides = [1, 1]} : vector<64x32xf32> to vector<8x32xf32>
    %458 = vector.extract_strided_slice %380 {offsets = [8, 0], sizes = [8, 32], strides = [1, 1]} : vector<64x32xf32> to vector<8x32xf32>
    %459 = arith.addf %458, %449 : vector<8x32xf32>
    %460 = math.exp %459 : vector<8x32xf32>
    %461 = arith.mulf %457, %460 : vector<8x32xf32>
    %462 = arith.addf %456, %461 : vector<8x32xf32>
    %463 = vector.extract_strided_slice %369 {offsets = [16, 0], sizes = [8, 32], strides = [1, 1]} : vector<64x32xf32> to vector<8x32xf32>
    %464 = vector.extract_strided_slice %380 {offsets = [16, 0], sizes = [8, 32], strides = [1, 1]} : vector<64x32xf32> to vector<8x32xf32>
    %465 = arith.addf %464, %449 : vector<8x32xf32>
    %466 = math.exp %465 : vector<8x32xf32>
    %467 = arith.mulf %463, %466 : vector<8x32xf32>
    %468 = arith.addf %462, %467 : vector<8x32xf32>
    %469 = vector.extract_strided_slice %369 {offsets = [24, 0], sizes = [8, 32], strides = [1, 1]} : vector<64x32xf32> to vector<8x32xf32>
    %470 = vector.extract_strided_slice %380 {offsets = [24, 0], sizes = [8, 32], strides = [1, 1]} : vector<64x32xf32> to vector<8x32xf32>
    %471 = arith.addf %470, %449 : vector<8x32xf32>
    %472 = math.exp %471 : vector<8x32xf32>
    %473 = arith.mulf %469, %472 : vector<8x32xf32>
    %474 = arith.addf %468, %473 : vector<8x32xf32>
    %475 = vector.extract_strided_slice %369 {offsets = [32, 0], sizes = [8, 32], strides = [1, 1]} : vector<64x32xf32> to vector<8x32xf32>
    %476 = vector.extract_strided_slice %380 {offsets = [32, 0], sizes = [8, 32], strides = [1, 1]} : vector<64x32xf32> to vector<8x32xf32>
    %477 = arith.addf %476, %449 : vector<8x32xf32>
    %478 = math.exp %477 : vector<8x32xf32>
    %479 = arith.mulf %475, %478 : vector<8x32xf32>
    %480 = arith.addf %474, %479 : vector<8x32xf32>
    %481 = vector.extract_strided_slice %369 {offsets = [40, 0], sizes = [8, 32], strides = [1, 1]} : vector<64x32xf32> to vector<8x32xf32>
    %482 = vector.extract_strided_slice %380 {offsets = [40, 0], sizes = [8, 32], strides = [1, 1]} : vector<64x32xf32> to vector<8x32xf32>
    %483 = arith.addf %482, %449 : vector<8x32xf32>
    %484 = math.exp %483 : vector<8x32xf32>
    %485 = arith.mulf %481, %484 : vector<8x32xf32>
    %486 = arith.addf %480, %485 : vector<8x32xf32>
    %487 = vector.extract_strided_slice %369 {offsets = [48, 0], sizes = [8, 32], strides = [1, 1]} : vector<64x32xf32> to vector<8x32xf32>
    %488 = vector.extract_strided_slice %380 {offsets = [48, 0], sizes = [8, 32], strides = [1, 1]} : vector<64x32xf32> to vector<8x32xf32>
    %489 = arith.addf %488, %449 : vector<8x32xf32>
    %490 = math.exp %489 : vector<8x32xf32>
    %491 = arith.mulf %487, %490 : vector<8x32xf32>
    %492 = arith.addf %486, %491 : vector<8x32xf32>
    %493 = vector.extract_strided_slice %369 {offsets = [56, 0], sizes = [8, 32], strides = [1, 1]} : vector<64x32xf32> to vector<8x32xf32>
    %494 = vector.extract_strided_slice %380 {offsets = [56, 0], sizes = [8, 32], strides = [1, 1]} : vector<64x32xf32> to vector<8x32xf32>
    %495 = arith.addf %494, %449 : vector<8x32xf32>
    %496 = math.exp %495 : vector<8x32xf32>
    %497 = arith.mulf %493, %496 : vector<8x32xf32>
    %498 = arith.addf %492, %497 : vector<8x32xf32>
    %499 = vector.broadcast %441 : vector<8x1xf32> to vector<8x32xf32>
    %500 = arith.mulf %498, %499 : vector<8x32xf32>
    %c0_207 = arith.constant 0 : index
    %c0_208 = arith.constant 0 : index
    %501 = vector.load %arg10[%c0_207, %c0_208] : memref<1x32xf32, #tpu.memory_space<vmem>>, vector<1x32xf32>
    %502 = vector.broadcast %501 : vector<1x32xf32> to vector<8x32xf32>
    %503 = arith.mulf %500, %502 : vector<8x32xf32>
    %cst_209 = arith.constant dense<0.000000e+00> : vector<8xf32>
    %504 = vector.multi_reduction <add>, %503, %cst_209 [1] : vector<8x32xf32> to vector<8xf32>
    %505 = vector.shape_cast %504 : vector<8xf32> to vector<8x1xf32>
    %c0_210 = arith.constant 0 : index
    %c0_211 = arith.constant 0 : index
    %506 = vector.load %arg11[%c0_210, %c0_211] : memref<1x1xf32, #tpu.memory_space<vmem>>, vector<1x1xf32>
    %507 = vector.broadcast %506 : vector<1x1xf32> to vector<8x1xf32>
    %508 = arith.addf %505, %507 : vector<8x1xf32>
    %c0_212 = arith.constant 0 : index
    %c0_213 = arith.constant 0 : index
    %509 = vector.load %arg12[%c0_212, %c0_213] : memref<8x1xf32, #tpu.memory_space<vmem>>, vector<8x1xf32>
    tpu.vector_store %arg12[%c0_212, %c0_213], %508 {strides = array<i32>} : memref<8x1xf32, #tpu.memory_space<vmem>>, vector<8x1xf32>,
    return
  }
}

</mosaic_0001>

<llo_original>
// kernel: tpu_custom_call.1
$region0: #{tpu_custom_call.1}
  #allocation0 [shape = 'u32[]', space=smem, size = 0x4, offset = 0x4, fixed_abs, tag = 'smem constant byte address 0x4 - core index']
  #allocation1 [shape = 'u32[144,128]{1,0:T(1,128)}', space=vmem, size = 0x12000, scoped, tag = 'internal scratch']
  #allocation2 [shape = 'bf16[64,256]{1,0:T(8,128)(2,1)}', space=vmem, size = 0x8000, scoped, tag = 'scratch operand']
  #allocation3 [shape = 'f32[64,32]{1,0:T(8,128)}', space=vmem, size = 0x8000, scoped, tag = 'scratch operand']
  #allocation4 [shape = 'f32[1,1]{1,0:T(1,128)S(1)}', space=vmem, size = 0x200, scoped, tag = 'scoped memory for tpu_custom_call.1']
  #allocation5 [shape = 'f32[1,1]{1,0:T(1,128)S(1)}', space=vmem, size = 0x200, scoped, tag = 'scoped memory for tpu_custom_call.1']
  %s0 = inlined_call_operand.vmem [shape: bf16[64,32], index: 0, kind: input, shape index: {}]
  %s1 = inlined_call_operand.vmem [shape: f32[64,64], index: 1, kind: input, shape index: {}]
  %s2 = inlined_call_operand.hbm [shape: f32[1,256], index: 2, kind: input, shape index: {}]
  %s3 = inlined_call_operand.vmem [shape: bf16[32,256], index: 3, kind: input, shape index: {}]
  %s4 = inlined_call_operand.hbm [shape: bf16[64,256], index: 4, kind: input, shape index: {}]
  %s5 = inlined_call_operand.hbm [shape: f32[1,256], index: 5, kind: input, shape index: {}]
  %s6 = inlined_call_operand.hbm [shape: bf16[32,64], index: 6, kind: input, shape index: {}]
  %s7 = inlined_call_operand.hbm [shape: f32[1,64], index: 7, kind: input, shape index: {}]
  %s8 = inlined_call_operand.vmem [shape: bf16[64,32], index: 8, kind: input, shape index: {}]
  %s9 = inlined_call_operand.<no memory space> [shape: f32[1,1], index: 9, kind: input, shape index: {}]
  %s10 = inlined_call_operand.vmem [shape: f32[1,32], index: 10, kind: input, shape index: {}]
  %s11 = inlined_call_operand.<no memory space> [shape: f32[1,1], index: 11, kind: input, shape index: {}]
  %s12 = inlined_call_operand.vmem [shape: f32[8,1], index: 12, kind: output, shape index: {0}]
  %s13 = inlined_call_operand.hbm [shape: f32[8,8], index: 13, kind: output, shape index: {1}]
  %14 = xla_tuple %s12, %s13
  %s15 = sld [smem:[#allocation0]]
  $region86: #{tpu_custom_call.1} parent=0
    _
  %s17 = ssub.s32 1, %s15
  %s18 = scalar_select 0, %s17, %s15
  %v19 = vstv %s9
  %20 = vst [vmem:[#allocation4] sm:$0x1] %v19
  %v21 = vstv %s11
  %22 = vst [vmem:[#allocation5] sm:$0x1] %v21
  $region1: #{tpu_custom_call.1} parent=0
    #allocation6 [shape = 'u8[1024]{0}', space=vmem, size = 0x400, scoped, tag = 'input window, operand 2, single buffered']
    #allocation7 [shape = 's32[1]{0}', space=sflag, size = 0x4, scoped, tag = 'scoped memory for tpu_custom_call.1']
    #allocation8 [shape = 's32[1]{0}', space=sflag, size = 0x4, scoped, tag = 'scoped memory for tpu_custom_call.1']
    #allocation9 [shape = 'u8[32768]{0}', space=vmem, size = 0x8000, scoped, tag = 'input window, operand 4, single buffered']
    #allocation10 [shape = 's32[1]{0}', space=sflag, size = 0x4, scoped, tag = 'scoped memory for tpu_custom_call.1']
    #allocation11 [shape = 'u8[1024]{0}', space=vmem, size = 0x400, scoped, tag = 'input window, operand 5, single buffered']
    #allocation12 [shape = 'u8[8192]{0}', space=vmem, size = 0x2000, scoped, tag = 'input window, operand 6, single buffered']
    #allocation13 [shape = 's32[1]{0}', space=sflag, size = 0x4, scoped, tag = 'scoped memory for tpu_custom_call.1']
    #allocation14 [shape = 'u8[512]{0}', space=vmem, size = 0x400, scoped, tag = 'input window, operand 7, single buffered']
    #allocation15 [shape = 'u8[4096]{0}', space=vmem, size = 0x1000, scoped, tag = 'output window, operand 1, single buffered']
    %23 = vsyncpa [#allocation7], 0
    %24 = vsyncpa [#allocation10], 0
    %25 = vsyncpa [#allocation13], 0
    %26 = vsyncpa [#allocation8], 0
    // Predicated region
    $region2: #{tpu_custom_call.1} parent=1 // pred_check
      _
    $region3: #{tpu_custom_call.1} parent=1 // pred_check_branch
      %28 = sbr.rel (0) target = $region5
    $region4: #{tpu_custom_call.1} parent=1 // pred_region
      _
    $region5: #{tpu_custom_call.1} parent=1 // pred_fallthru
      _
    // Predicated region
    $region6: #{tpu_custom_call.1} parent=1 // pred_check
      _
    $region7: #{tpu_custom_call.1} parent=1 // pred_check_branch
      %30 = sbr.rel (0) target = $region9
    $region8: #{tpu_custom_call.1} parent=1 // pred_region
      _
    $region9: #{tpu_custom_call.1} parent=1 // pred_fallthru
      _
    // Predicated region
    $region10: #{tpu_custom_call.1} parent=1 // pred_check
      _
    $region11: #{tpu_custom_call.1} parent=1 // pred_check_branch
      %32 = sbr.rel (0) target = $region13
    $region12: #{tpu_custom_call.1} parent=1 // pred_region
      %s34 = ssub.s32 32, 32
      %35 = vsyncadd [#allocation7], %s34
      %s37 = sshll.u32 [#allocation6], 4
      %s38 = int_to_ptr.vmem [resolvable:$true] %s37
      %40 = dma.hbm_to_vmem [thread:$0]  %s2, 32, %s38, [#allocation7]
    $region13: #{tpu_custom_call.1} parent=1 // pred_fallthru
      _
    // Predicated region
    $region14: #{tpu_custom_call.1} parent=1 // pred_check
      _
    $region15: #{tpu_custom_call.1} parent=1 // pred_check_branch
      %42 = sbr.rel (0) target = $region17
    $region16: #{tpu_custom_call.1} parent=1 // pred_region
      _
    $region17: #{tpu_custom_call.1} parent=1 // pred_fallthru
      _
    // Predicated region
    $region18: #{tpu_custom_call.1} parent=1 // pred_check
      _
    $region19: #{tpu_custom_call.1} parent=1 // pred_check_branch
      %44 = sbr.rel (0) target = $region21
    $region20: #{tpu_custom_call.1} parent=1 // pred_region
      %s46 = ssub.s32 1024, 1024
      %47 = vsyncadd [#allocation10], %s46
      %s48 = sshll.u32 [#allocation9], 4
      %s49 = int_to_ptr.vmem [resolvable:$true] %s48
      %54 = dma.hbm_to_vmem [thread:$0]  %s4, 1024, %s49, [#allocation10], 128, 128, 8
    $region21: #{tpu_custom_call.1} parent=1 // pred_fallthru
      _
    // Predicated region
    $region22: #{tpu_custom_call.1} parent=1 // pred_check
      _
    $region23: #{tpu_custom_call.1} parent=1 // pred_check_branch
      %56 = sbr.rel (0) target = $region25
    $region24: #{tpu_custom_call.1} parent=1 // pred_region
      %s58 = ssub.s32 32, 32
      %59 = vsyncadd [#allocation10], %s58
      %s61 = sshll.u32 [#allocation11], 4
      %s62 = int_to_ptr.vmem [resolvable:$true] %s61
      %64 = dma.hbm_to_vmem [thread:$0]  %s5, 32, %s62, [#allocation10]
    $region25: #{tpu_custom_call.1} parent=1 // pred_fallthru
      _
    // Predicated region
    $region26: #{tpu_custom_call.1} parent=1 // pred_check
      _
    $region27: #{tpu_custom_call.1} parent=1 // pred_check_branch
      %66 = sbr.rel (0) target = $region29
    $region28: #{tpu_custom_call.1} parent=1 // pred_region
      %s68 = ssub.s32 256, 256
      %69 = vsyncadd [#allocation13], %s68
      %s70 = sshll.u32 [#allocation12], 4
      %s71 = int_to_ptr.vmem [resolvable:$true] %s70
      %76 = dma.hbm_to_vmem [thread:$0]  %s6, 256, %s71, [#allocation13], 64, 64, 4
    $region29: #{tpu_custom_call.1} parent=1 // pred_fallthru
      _
    // Predicated region
    $region30: #{tpu_custom_call.1} parent=1 // pred_check
      _
    $region31: #{tpu_custom_call.1} parent=1 // pred_check_branch
      %78 = sbr.rel (0) target = $region33
    $region32: #{tpu_custom_call.1} parent=1 // pred_region
      %s80 = ssub.s32 16, 16
      %81 = vsyncadd [#allocation13], %s80
      %s83 = sshll.u32 [#allocation14], 4
      %s84 = int_to_ptr.vmem [resolvable:$true] %s83
      %86 = dma.hbm_to_vmem [thread:$0]  %s7, 16, %s84, [#allocation13]
    $region33: #{tpu_custom_call.1} parent=1 // pred_fallthru
      _
    // Predicated region
    $region34: #{tpu_custom_call.1} parent=1 // pred_check
      _
    $region35: #{tpu_custom_call.1} parent=1 // pred_check_branch
      %88 = sbr.rel (0) target = $region37
    $region36: #{tpu_custom_call.1} parent=1 // pred_region
      _
    $region37: #{tpu_custom_call.1} parent=1 // pred_fallthru
      _
    // Predicated region
    $region38: #{tpu_custom_call.1} parent=1 // pred_check
      _
    $region39: #{tpu_custom_call.1} parent=1 // pred_check_branch
      %90 = sbr.rel (0) target = $region41
    $region40: #{tpu_custom_call.1} parent=1 // pred_region
      _
    $region41: #{tpu_custom_call.1} parent=1 // pred_fallthru
      _
    // Predicated region
    $region42: #{tpu_custom_call.1} parent=1 // pred_check
      _
    $region43: #{tpu_custom_call.1} parent=1 // pred_check_branch
      %92 = sbr.rel (0) target = $region45
    $region44: #{tpu_custom_call.1} parent=1 // pred_region
      _
    $region45: #{tpu_custom_call.1} parent=1 // pred_fallthru
      _
    // Predicated region
    $region46: #{tpu_custom_call.1} parent=1 // pred_check
      _
    $region47: #{tpu_custom_call.1} parent=1 // pred_check_branch
      %94 = sbr.rel (0) target = $region49
    $region48: #{tpu_custom_call.1} parent=1 // pred_region
      _
    $region49: #{tpu_custom_call.1} parent=1 // pred_fallthru
      _
    // Predicated region
    $region50: #{tpu_custom_call.1} parent=1 // pred_check
      _
    $region51: #{tpu_custom_call.1} parent=1 // pred_check_branch
      %96 = sbr.rel (0) target = $region53
    $region52: #{tpu_custom_call.1} parent=1 // pred_region
      %97 = dma.done [#allocation7], 32
    $region53: #{tpu_custom_call.1} parent=1 // pred_fallthru
      _
    // Predicated region
    $region54: #{tpu_custom_call.1} parent=1 // pred_check
      _
    $region55: #{tpu_custom_call.1} parent=1 // pred_check_branch
      %99 = sbr.rel (0) target = $region57
    $region56: #{tpu_custom_call.1} parent=1 // pred_region
      %100 = dma.done [#allocation10], 1024
    $region57: #{tpu_custom_call.1} parent=1 // pred_fallthru
      _
    // Predicated region
    $region58: #{tpu_custom_call.1} parent=1 // pred_check
      _
    $region59: #{tpu_custom_call.1} parent=1 // pred_check_branch
      %102 = sbr.rel (0) target = $region61
    $region60: #{tpu_custom_call.1} parent=1 // pred_region
      %103 = dma.done [#allocation10], 32
    $region61: #{tpu_custom_call.1} parent=1 // pred_fallthru
      _
    // Predicated region
    $region62: #{tpu_custom_call.1} parent=1 // pred_check
      _
    $region63: #{tpu_custom_call.1} parent=1 // pred_check_branch
      %105 = sbr.rel (0) target = $region65
    $region64: #{tpu_custom_call.1} parent=1 // pred_region
      %106 = dma.done [#allocation13], 256
    $region65: #{tpu_custom_call.1} parent=1 // pred_fallthru
      _
    // Predicated region
    $region66: #{tpu_custom_call.1} parent=1 // pred_check
      _
    $region67: #{tpu_custom_call.1} parent=1 // pred_check_branch
      %108 = sbr.rel (0) target = $region69
    $region68: #{tpu_custom_call.1} parent=1 // pred_region
      %109 = dma.done [#allocation13], 16
    $region69: #{tpu_custom_call.1} parent=1 // pred_fallthru
      _
    %v111 = vld [vmem:[%s0] sm:$0xf]
    %v112 = vld [vmem:[%s0 + $0x4] sm:$0xf]
    %v113 = vld [vmem:[%s0 + $0x8] sm:$0xf]
    %v114 = vld [vmem:[%s0 + $0xc] sm:$0xf]
    %v115 = vld [vmem:[%s0 + $0x10] sm:$0xf]
    %v116 = vld [vmem:[%s0 + $0x14] sm:$0xf]
    %v117 = vld [vmem:[%s0 + $0x18] sm:$0xf]
    %v118 = vld [vmem:[%s0 + $0x1c] sm:$0xf]
    %v119 = vld [vmem:[%s3] sm:$0xff]
    %v120 = vld [vmem:[%s3 + $0x8] sm:$0xff]
    %v121 = vld [vmem:[%s3 + $0x10] sm:$0xff]
    %v122 = vld [vmem:[%s3 + $0x18] sm:$0xff]
    %v123 = vld [vmem:[#allocation11] sm:$0x3]
    %v125 = vlaneseq
    %v126 = vshrl.u32 %v125, 7
    %v127 = vsub.s32 0, %v126
    %v128 = vrot.slane %v123, %v127
    %v129 = vlaneseq
    %v130 = vshrl.u32 %v129, 7
    %v131 = vsub.s32 1, %v130
    %v132 = vrot.slane %v123, %v131
    %v143 = vunpack.c.l.b16 %v111
    %v144 = vunpack.c.l.b16 %v112
    %v145 = vunpack.c.l.b16 %v113
    %v146 = vunpack.c.l.b16 %v114
    %v147 = vunpack.c.l.b16 %v115
    %v148 = vunpack.c.l.b16 %v116
    %v149 = vunpack.c.l.b16 %v117
    %v150 = vunpack.c.l.b16 %v118
    %v151 = vpack.c.b16 %v144, %v143
    %v152 = vpack.c.b16 %v146, %v145
    %v153 = vpack.c.b16 %v148, %v147
    %v154 = vpack.c.b16 %v150, %v149
    %v159 = vunpack.c.l.b16 %v119
    %v160 = vunpack.c.h.b16 %v119
    %v161 = vunpack.c.l.b16 %v120
    %v162 = vunpack.c.h.b16 %v120
    %v163 = vunpack.c.l.b16 %v121
    %v164 = vunpack.c.h.b16 %v121
    %v165 = vunpack.c.l.b16 %v122
    %v166 = vunpack.c.h.b16 %v122
    %v167 = vpack.c.b16 %v161, %v159
    %v168 = vpack.c.b16 %v162, %v160
    %v169 = vpack.c.b16 %v165, %v163
    %v170 = vpack.c.b16 %v166, %v164
    %vm175 = vcmask 261120
    %v177 = vsel %vm175, %v151, 0
    %v180 = vsel %vm175, %v152, 0
    %v183 = vsel %vm175, %v153, 0
    %v186 = vsel %vm175, %v154, 0
    %188 = vmatprep.subr.bf16.mxu0 0
    %189 = vmatpush1.bf16.msra.mxu0 0
    %190 = vmatprep.subr.bf16.mxu0 0
    %191 = vmatpush1.bf16.msra.mxu0 0
    %192 = vmatprep.subr.bf16.mxu0 0
    %193 = vmatpush1.bf16.msra.mxu0 0
    %194 = vmatprep.subr.bf16.mxu0 0
    %195 = vmatpush1.bf16.msra.mxu0 0
    %196 = vmatprep.subr.bf16.mxu0 0
    %197 = vmatpush1.bf16.msra.mxu0 0
    %198 = vmatprep.subr.bf16.mxu0 0
    %199 = vmatpush1.bf16.msra.mxu0 0
    %200 = vmatprep.subr.bf16.mxu0 %v170
    %201 = vmatpush1.bf16.msra.mxu0 %v169
    %202 = vmatprep.subr.bf16.mxu0 %v168
    %203 = vmatpush1.bf16.msra.mxu0 %v167
    %204 = vmatprep.subr.bf16.mxu0 0
    %205 = vmatpush2.bf16.msra.mxu0 0
    %206 = vmatprep.subr.bf16.mxu0 0
    %207 = vmatpush2.bf16.msra.mxu0 0
    %208 = vmatprep.subr.bf16.mxu0 0
    %209 = vmatpush2.bf16.msra.mxu0 0
    %210 = vmatprep.subr.bf16.mxu0 0
    %211 = vmatpush2.bf16.msra.mxu0 0
    %212 = vmatprep.subr.bf16.mxu0 0
    %213 = vmatpush2.bf16.msra.mxu0 0
    %214 = vmatprep.subr.bf16.mxu0 0
    %215 = vmatpush2.bf16.msra.mxu0 0
    %216 = vmatprep.subr.bf16.mxu0 0
    %217 = vmatpush2.bf16.msra.mxu0 0
    %218 = vmatprep.subr.bf16.mxu0 0
    %219 = vmatpush2.bf16.msra.mxu0 0
    %220 = vmatprep.mubr.bf16.mxu0 0
    %221 = vmatmul.mubr.bf16.gmra.mxu0 %v177
    %v222 = vpop.f32.mrf.mxu0
    %v223 = vadd.f32 %v128, %v222
    %v224 = vpop.f32.mrf.mxu0
    %v225 = vadd.f32 %v132, %v224
    %v226 = vpop.f32.mrf.mxu0
    %v227 = vadd.f32 %v128, %v226
    %v228 = vpop.f32.mrf.mxu0
    %v229 = vadd.f32 %v132, %v228
    %230 = vmatprep.mubr.bf16.mxu0 0
    %231 = vmatmul.mubr.bf16.gmra.mxu0 %v180
    %v232 = vpop.f32.mrf.mxu0
    %v233 = vadd.f32 %v128, %v232
    %v234 = vpop.f32.mrf.mxu0
    %v235 = vadd.f32 %v132, %v234
    %v236 = vpop.f32.mrf.mxu0
    %v237 = vadd.f32 %v128, %v236
    %v238 = vpop.f32.mrf.mxu0
    %v239 = vadd.f32 %v132, %v238
    %240 = vmatprep.mubr.bf16.mxu0 0
    %241 = vmatmul.mubr.bf16.gmra.mxu0 %v183
    %v242 = vpop.f32.mrf.mxu0
    %v243 = vadd.f32 %v128, %v242
    %v244 = vpop.f32.mrf.mxu0
    %v245 = vadd.f32 %v132, %v244
    %v246 = vpop.f32.mrf.mxu0
    %v247 = vadd.f32 %v128, %v246
    %v248 = vpop.f32.mrf.mxu0
    %v249 = vadd.f32 %v132, %v248
    %250 = vmatprep.mubr.bf16.mxu0 0
    %251 = vmatmul.mubr.bf16.gmra.mxu0 %v186
    %v252 = vpop.f32.mrf.mxu0
    %v253 = vadd.f32 %v128, %v252
    %v254 = vpop.f32.mrf.mxu0
    %v255 = vadd.f32 %v132, %v254
    %v256 = vpop.f32.mrf.mxu0
    %v257 = vadd.f32 %v128, %v256
    %v258 = vpop.f32.mrf.mxu0
    %v259 = vadd.f32 %v132, %v258
    %260 = vdwg.mxu0
    %v261 = vpack.c.bf16 %v227, %v223
    %v262 = vpack.c.bf16 %v229, %v225
    %v263 = vpack.c.bf16 %v237, %v233
    %v264 = vpack.c.bf16 %v239, %v235
    %v265 = vpack.c.bf16 %v247, %v243
    %v266 = vpack.c.bf16 %v249, %v245
    %v267 = vpack.c.bf16 %v257, %v253
    %v268 = vpack.c.bf16 %v259, %v255
    %v277 = vunpack.c.l.b16 %v261
    %v278 = vunpack.c.l.b16 %v262
    %v279 = vunpack.c.h.b16 %v261
    %v280 = vunpack.c.h.b16 %v262
    %v281 = vunpack.c.l.b16 %v263
    %v282 = vunpack.c.l.b16 %v264
    %v283 = vunpack.c.h.b16 %v263
    %v284 = vunpack.c.h.b16 %v264
    %v285 = vunpack.c.l.b16 %v265
    %v286 = vunpack.c.l.b16 %v266
    %v287 = vunpack.c.h.b16 %v265
    %v288 = vunpack.c.h.b16 %v266
    %v289 = vunpack.c.l.b16 %v267
    %v290 = vunpack.c.l.b16 %v268
    %v291 = vunpack.c.h.b16 %v267
    %v292 = vunpack.c.h.b16 %v268
    %v293 = vpack.c.b16 %v278, %v277
    %v294 = vpack.c.b16 %v280, %v279
    %v295 = vpack.c.b16 %v282, %v281
    %v296 = vpack.c.b16 %v284, %v283
    %v297 = vpack.c.b16 %v286, %v285
    %v298 = vpack.c.b16 %v288, %v287
    %v299 = vpack.c.b16 %v290, %v289
    %v300 = vpack.c.b16 %v292, %v291
    %309 = vst [vmem:[#allocation2] sm:$0xff] %v293
    %310 = vst [vmem:[#allocation2 + $0x8] sm:$0xff] %v294
    %311 = vst [vmem:[#allocation2 + $0x10] sm:$0xff] %v295
    %312 = vst [vmem:[#allocation2 + $0x18] sm:$0xff] %v296
    %313 = vst [vmem:[#allocation2 + $0x20] sm:$0xff] %v297
    %314 = vst [vmem:[#allocation2 + $0x28] sm:$0xff] %v298
    %315 = vst [vmem:[#allocation2 + $0x30] sm:$0xff] %v299
    %316 = vst [vmem:[#allocation2 + $0x38] sm:$0xff] %v300
    %v317 = vld [vmem:[#allocation9] sm:$0xff]
    %v318 = vld [vmem:[#allocation9 + $0x8] sm:$0xff]
    %v319 = vld [vmem:[#allocation9 + $0x10] sm:$0xff]
    %v320 = vld [vmem:[#allocation9 + $0x18] sm:$0xff]
    %v321 = vld [vmem:[#allocation9 + $0x20] sm:$0xff]
    %v322 = vld [vmem:[#allocation9 + $0x28] sm:$0xff]
    %v323 = vld [vmem:[#allocation9 + $0x30] sm:$0xff]
    %v324 = vld [vmem:[#allocation9 + $0x38] sm:$0xff]
    %v325 = vld [vmem:[#allocation6] sm:$0x3]
    %v327 = vlaneseq
    %v328 = vshrl.u32 %v327, 7
    %v329 = vsub.s32 0, %v328
    %v330 = vrot.slane %v325, %v329
    %v331 = vlaneseq
    %v332 = vshrl.u32 %v331, 7
    %v333 = vsub.s32 1, %v332
    %v334 = vrot.slane %v325, %v333
    %vm337 = vcmp.gt.f32.partialorder %v330, 0.5
    %vm338 = vcmp.gt.f32.partialorder %v334, 0.5
    %339 = vst.msk [vmem:[#allocation3] sm:$0xff] %vm175, 0.0
    %340 = vst.msk [vmem:[#allocation3 + $0x8] sm:$0xff] %vm175, 0.0
    %341 = vst.msk [vmem:[#allocation3 + $0x10] sm:$0xff] %vm175, 0.0
    %342 = vst.msk [vmem:[#allocation3 + $0x18] sm:$0xff] %vm175, 0.0
    %343 = vst.msk [vmem:[#allocation3 + $0x20] sm:$0xff] %vm175, 0.0
    %344 = vst.msk [vmem:[#allocation3 + $0x28] sm:$0xff] %vm175, 0.0
    %345 = vst.msk [vmem:[#allocation3 + $0x30] sm:$0xff] %vm175, 0.0
    %346 = vst.msk [vmem:[#allocation3 + $0x38] sm:$0xff] %vm175, 0.0
    %v347 = vld [vmem:[#allocation2] sm:$0xff]
    %v348 = vld [vmem:[#allocation2 + $0x38] sm:$0xff]
    %vm349 = vmpackc.low %vm338, %vm337
    %v350 = vsel %vm349, %v347, %v348
    %v351 = vunpack.c.l.bf16 %v350
    %v352 = vunpack.c.h.bf16 %v350
    %v361 = vunpack.c.l.b16 %v317
    %v362 = vunpack.c.h.b16 %v317
    %v363 = vunpack.c.l.b16 %v318
    %v364 = vunpack.c.h.b16 %v318
    %v365 = vunpack.c.l.b16 %v319
    %v366 = vunpack.c.h.b16 %v319
    %v367 = vunpack.c.l.b16 %v320
    %v368 = vunpack.c.h.b16 %v320
    %v369 = vunpack.c.l.b16 %v321
    %v370 = vunpack.c.h.b16 %v321
    %v371 = vunpack.c.l.b16 %v322
    %v372 = vunpack.c.h.b16 %v322
    %v373 = vunpack.c.l.b16 %v323
    %v374 = vunpack.c.h.b16 %v323
    %v375 = vunpack.c.l.b16 %v324
    %v376 = vunpack.c.h.b16 %v324
    %v377 = vpack.c.b16 %v363, %v361
    %v378 = vpack.c.b16 %v364, %v362
    %v379 = vpack.c.b16 %v367, %v365
    %v380 = vpack.c.b16 %v368, %v366
    %v381 = vpack.c.b16 %v371, %v369
    %v382 = vpack.c.b16 %v372, %v370
    %v383 = vpack.c.b16 %v375, %v373
    %v384 = vpack.c.b16 %v376, %v374
    %vm393 = vcmask 523264
    %v395 = vsel %vm393, 0, 0
    %397 = vmatprep.subr.bf16.mxu0 0
    %398 = vmatpush1.bf16.msra.mxu0 0
    %399 = vmatprep.subr.bf16.mxu0 0
    %400 = vmatpush1.bf16.msra.mxu0 0
    %401 = vmatprep.subr.bf16.mxu0 0
    %402 = vmatpush1.bf16.msra.mxu0 0
    %403 = vmatprep.subr.bf16.mxu0 0
    %404 = vmatpush1.bf16.msra.mxu0 0
    %405 = vmatprep.subr.bf16.mxu0 %v384
    %406 = vmatpush1.bf16.msra.mxu0 %v383
    %407 = vmatprep.subr.bf16.mxu0 %v382
    %408 = vmatpush1.bf16.msra.mxu0 %v381
    %409 = vmatprep.subr.bf16.mxu0 %v380
    %410 = vmatpush1.bf16.msra.mxu0 %v379
    %411 = vmatprep.subr.bf16.mxu0 %v378
    %412 = vmatpush1.bf16.msra.mxu0 %v377
    %413 = vmatprep.subr.bf16.mxu0 0
    %414 = vmatpush2.bf16.msra.mxu0 0
    %415 = vmatprep.subr.bf16.mxu0 0
    %416 = vmatpush2.bf16.msra.mxu0 0
    %417 = vmatprep.subr.bf16.mxu0 0
    %418 = vmatpush2.bf16.msra.mxu0 0
    %419 = vmatprep.subr.bf16.mxu0 0
    %420 = vmatpush2.bf16.msra.mxu0 0
    %421 = vmatprep.subr.bf16.mxu0 0
    %422 = vmatpush2.bf16.msra.mxu0 0
    %423 = vmatprep.subr.bf16.mxu0 0
    %424 = vmatpush2.bf16.msra.mxu0 0
    %425 = vmatprep.subr.bf16.mxu0 0
    %426 = vmatpush2.bf16.msra.mxu0 0
    %427 = vmatprep.subr.bf16.mxu0 0
    %428 = vmatpush2.bf16.msra.mxu0 0
    %429 = vmatprep.mubr.bf16.mxu0 0
    %430 = vmatmul.mubr.bf16.gmra.mxu0 %v395
    %v431 = vpop.f32.mrf.mxu0
    %v432 = vadd.f32 0.0, %v431
    %v433 = vpop.f32.mrf.mxu0
    %v434 = vadd.f32 0.0, %v433
    %v435 = vpop.f32.mrf.mxu0
    %v436 = vpop.f32.mrf.mxu0
    %437 = vdwg.mxu0
    %v438 = vadd.f32 %v351, %v432
    %v439 = vadd.f32 %v352, %v434
    %v440 = vxor.u32 %v438, 2147483648
    %v441 = vxor.u32 %v439, 2147483648
    %v442 = vmul.f32 %v440, 1.442695
    %v443 = vpow.pop %v442
    %v444 = vmul.f32 %v441, 1.442695
    %v445 = vpow.pop %v444
    %v446 = vadd.f32 %v443, 1.0
    %v447 = vadd.f32 %v445, 1.0
    %v448 = vrcp.pop %v446
    %v449 = vmul.f32 1.0, %v448
    %v450 = vrcp.pop %v447
    %v451 = vmul.f32 1.0, %v450
    %v452 = vtanh.pop %v439
    %v453 = vmul.f32 %v449, 0.0
    %455 = vrot.lane.b32.xlu0 %v452, 64
    %v456 = vpop.permute.xlu0 %455
    %v458 = vmul.f32 %v449, %v456
    %460 = vrot.lane.b32.xlu0 %v458, 64
    %v461 = vpop.permute.xlu0 %460
    %v463 = vadd.f32 %v453, %v461
    %v464 = vtanh.pop %v463
    %466 = vrot.lane.b32.xlu0 %v464, 64
    %v467 = vpop.permute.xlu0 %466
    %v469 = vmul.f32 %v451, %v467
    %v470 = vld [vmem:[%s1] sm:$0xff]
    %v471 = vld [vmem:[%s1 + $0x38] sm:$0xff]
    %v472 = vsel %vm337, %v470, %v471
    %vm473 = vcmp.gt.f32.partialorder %v472, 0.5
    %v474 = vsel %vm473, %v469, 0.0
    %476 = vrot.lane.b32.xlu0 %v463, 64
    %v477 = vpop.permute.xlu0 %476
    %v479 = vsel %vm473, %v477, 0.0
    %v480 = vld [vmem:[#allocation3] sm:$0xff]
    %v481 = vadd.f32 %v480, %v474
    %482 = vst.msk [vmem:[#allocation3] sm:$0xff] %vm175, %v481
    %v483 = vld [vmem:[#allocation3 + $0x38] sm:$0xff]
    %485 = vrot.lane.b32.xlu0 %v474, 96
    %v486 = vpop.permute.xlu0 %485
    %v488 = vadd.f32 %v483, %v486
    %489 = vst.msk [vmem:[#allocation3 + $0x38] sm:$0xff] %vm175, %v488
    %v490 = vld [vmem:[#allocation2 + $0x8] sm:$0xff]
    %v491 = vld [vmem:[#allocation2 + $0x30] sm:$0xff]
    %v492 = vsel %vm349, %v490, %v491
    %v493 = vunpack.c.l.bf16 %v492
    %v494 = vunpack.c.h.bf16 %v492
    %v495 = vpack.c.bf16 %v474, %v474
    %v497 = vsel %vm393, %v495, 0
    %499 = vmatprep.subr.bf16.mxu0 0
    %500 = vmatpush1.bf16.msra.mxu0 0
    %501 = vmatprep.subr.bf16.mxu0 0
    %502 = vmatpush1.bf16.msra.mxu0 0
    %503 = vmatprep.subr.bf16.mxu0 0
    %504 = vmatpush1.bf16.msra.mxu0 0
    %505 = vmatprep.subr.bf16.mxu0 0
    %506 = vmatpush1.bf16.msra.mxu0 0
    %507 = vmatprep.subr.bf16.mxu0 %v384
    %508 = vmatpush1.bf16.msra.mxu0 %v383
    %509 = vmatprep.subr.bf16.mxu0 %v382
    %510 = vmatpush1.bf16.msra.mxu0 %v381
    %511 = vmatprep.subr.bf16.mxu0 %v380
    %512 = vmatpush1.bf16.msra.mxu0 %v379
    %513 = vmatprep.subr.bf16.mxu0 %v378
    %514 = vmatpush1.bf16.msra.mxu0 %v377
    %515 = vmatprep.subr.bf16.mxu0 0
    %516 = vmatpush2.bf16.msra.mxu0 0
    %517 = vmatprep.subr.bf16.mxu0 0
    %518 = vmatpush2.bf16.msra.mxu0 0
    %519 = vmatprep.subr.bf16.mxu0 0
    %520 = vmatpush2.bf16.msra.mxu0 0
    %521 = vmatprep.subr.bf16.mxu0 0
    %522 = vmatpush2.bf16.msra.mxu0 0
    %523 = vmatprep.subr.bf16.mxu0 0
    %524 = vmatpush2.bf16.msra.mxu0 0
    %525 = vmatprep.subr.bf16.mxu0 0
    %526 = vmatpush2.bf16.msra.mxu0 0
    %527 = vmatprep.subr.bf16.mxu0 0
    %528 = vmatpush2.bf16.msra.mxu0 0
    %529 = vmatprep.subr.bf16.mxu0 0
    %530 = vmatpush2.bf16.msra.mxu0 0
    %531 = vmatprep.mubr.bf16.mxu0 0
    %532 = vmatmul.mubr.bf16.gmra.mxu0 %v497
    %v533 = vpop.f32.mrf.mxu0
    %v534 = vadd.f32 0.0, %v533
    %v535 = vpop.f32.mrf.mxu0
    %v536 = vadd.f32 0.0, %v535
    %v537 = vpop.f32.mrf.mxu0
    %v538 = vpop.f32.mrf.mxu0
    %539 = vdwg.mxu0
    %v540 = vadd.f32 %v493, %v534
    %v541 = vadd.f32 %v494, %v536
    %v542 = vxor.u32 %v540, 2147483648
    %v543 = vxor.u32 %v541, 2147483648
    %v544 = vmul.f32 %v542, 1.442695
    %v545 = vpow.pop %v544
    %v546 = vmul.f32 %v543, 1.442695
    %v547 = vpow.pop %v546
    %v548 = vadd.f32 %v545, 1.0
    %v549 = vadd.f32 %v547, 1.0
    %v550 = vrcp.pop %v548
    %v551 = vmul.f32 1.0, %v550
    %v552 = vrcp.pop %v549
    %v553 = vmul.f32 1.0, %v552
    %v554 = vtanh.pop %v541
    %556 = vrot.lane.b32.xlu0 %v479, 64
    %v557 = vpop.permute.xlu0 %556
    %v559 = vmul.f32 %v551, %v557
    %561 = vrot.lane.b32.xlu0 %v554, 64
    %v562 = vpop.permute.xlu0 %561
    %v564 = vmul.f32 %v551, %v562
    %566 = vrot.lane.b32.xlu0 %v564, 64
    %v567 = vpop.permute.xlu0 %566
    %v569 = vadd.f32 %v559, %v567
    %v570 = vtanh.pop %v569
    %572 = vrot.lane.b32.xlu0 %v570, 64
    %v573 = vpop.permute.xlu0 %572
    %v575 = vmul.f32 %v553, %v573
    %v576 = vld [vmem:[%s1 + $0x8] sm:$0xff]
    %v577 = vld [vmem:[%s1 + $0x30] sm:$0xff]
    %v578 = vsel %vm337, %v576, %v577
    %vm579 = vcmp.gt.f32.partialorder %v578, 0.5
    %v580 = vsel %vm579, %v575, %v474
    %582 = vrot.lane.b32.xlu0 %v569, 64
    %v583 = vpop.permute.xlu0 %582
    %v585 = vsel %vm579, %v583, %v479
    %v586 = vld [vmem:[#allocation3 + $0x8] sm:$0xff]
    %v587 = vsel %vm579, %v575, 0.0
    %v588 = vadd.f32 %v586, %v587
    %589 = vst.msk [vmem:[#allocation3 + $0x8] sm:$0xff] %vm175, %v588
    %v590 = vld [vmem:[#allocation3 + $0x30] sm:$0xff]
    %592 = vrot.lane.b32.xlu0 %v587, 96
    %v593 = vpop.permute.xlu0 %592
    %v595 = vadd.f32 %v590, %v593
    %596 = vst.msk [vmem:[#allocation3 + $0x30] sm:$0xff] %vm175, %v595
    %v597 = vld [vmem:[#allocation2 + $0x10] sm:$0xff]
    %v598 = vld [vmem:[#allocation2 + $0x28] sm:$0xff]
    %v599 = vsel %vm349, %v597, %v598
    %v600 = vunpack.c.l.bf16 %v599
    %v601 = vunpack.c.h.bf16 %v599
    %v602 = vpack.c.bf16 %v580, %v580
    %v604 = vsel %vm393, %v602, 0
    %606 = vmatprep.subr.bf16.mxu0 0
    %607 = vmatpush1.bf16.msra.mxu0 0
    %608 = vmatprep.subr.bf16.mxu0 0
    %609 = vmatpush1.bf16.msra.mxu0 0
    %610 = vmatprep.subr.bf16.mxu0 0
    %611 = vmatpush1.bf16.msra.mxu0 0
    %612 = vmatprep.subr.bf16.mxu0 0
    %613 = vmatpush1.bf16.msra.mxu0 0
    %614 = vmatprep.subr.bf16.mxu0 %v384
    %615 = vmatpush1.bf16.msra.mxu0 %v383
    %616 = vmatprep.subr.bf16.mxu0 %v382
    %617 = vmatpush1.bf16.msra.mxu0 %v381
    %618 = vmatprep.subr.bf16.mxu0 %v380
    %619 = vmatpush1.bf16.msra.mxu0 %v379
    %620 = vmatprep.subr.bf16.mxu0 %v378
    %621 = vmatpush1.bf16.msra.mxu0 %v377
    %622 = vmatprep.subr.bf16.mxu0 0
    %623 = vmatpush2.bf16.msra.mxu0 0
    %624 = vmatprep.subr.bf16.mxu0 0
    %625 = vmatpush2.bf16.msra.mxu0 0
    %626 = vmatprep.subr.bf16.mxu0 0
    %627 = vmatpush2.bf16.msra.mxu0 0
    %628 = vmatprep.subr.bf16.mxu0 0
    %629 = vmatpush2.bf16.msra.mxu0 0
    %630 = vmatprep.subr.bf16.mxu0 0
    %631 = vmatpush2.bf16.msra.mxu0 0
    %632 = vmatprep.subr.bf16.mxu0 0
    %633 = vmatpush2.bf16.msra.mxu0 0
    %634 = vmatprep.subr.bf16.mxu0 0
    %635 = vmatpush2.bf16.msra.mxu0 0
    %636 = vmatprep.subr.bf16.mxu0 0
    %637 = vmatpush2.bf16.msra.mxu0 0
    %638 = vmatprep.mubr.bf16.mxu0 0
    %639 = vmatmul.mubr.bf16.gmra.mxu0 %v604
    %v640 = vpop.f32.mrf.mxu0
    %v641 = vadd.f32 0.0, %v640
    %v642 = vpop.f32.mrf.mxu0
    %v643 = vadd.f32 0.0, %v642
    %v644 = vpop.f32.mrf.mxu0
    %v645 = vpop.f32.mrf.mxu0
    %646 = vdwg.mxu0
    %v647 = vadd.f32 %v600, %v641
    %v648 = vadd.f32 %v601, %v643
    %v649 = vxor.u32 %v647, 2147483648
    %v650 = vxor.u32 %v648, 2147483648
    %v651 = vmul.f32 %v649, 1.442695
    %v652 = vpow.pop %v651
    %v653 = vmul.f32 %v650, 1.442695
    %v654 = vpow.pop %v653
    %v655 = vadd.f32 %v652, 1.0
    %v656 = vadd.f32 %v654, 1.0
    %v657 = vrcp.pop %v655
    %v658 = vmul.f32 1.0, %v657
    %v659 = vrcp.pop %v656
    %v660 = vmul.f32 1.0, %v659
    %v661 = vtanh.pop %v648
    %663 = vrot.lane.b32.xlu0 %v585, 64
    %v664 = vpop.permute.xlu0 %663
    %v666 = vmul.f32 %v658, %v664
    %668 = vrot.lane.b32.xlu0 %v661, 64
    %v669 = vpop.permute.xlu0 %668
    %v671 = vmul.f32 %v658, %v669
    %673 = vrot.lane.b32.xlu0 %v671, 64
    %v674 = vpop.permute.xlu0 %673
    %v676 = vadd.f32 %v666, %v674
    %v677 = vtanh.pop %v676
    %679 = vrot.lane.b32.xlu0 %v677, 64
    %v680 = vpop.permute.xlu0 %679
    %v682 = vmul.f32 %v660, %v680
    %v683 = vld [vmem:[%s1 + $0x10] sm:$0xff]
    %v684 = vld [vmem:[%s1 + $0x28] sm:$0xff]
    %v685 = vsel %vm337, %v683, %v684
    %vm686 = vcmp.gt.f32.partialorder %v685, 0.5
    %v687 = vsel %vm686, %v682, %v580
    %689 = vrot.lane.b32.xlu0 %v676, 64
    %v690 = vpop.permute.xlu0 %689
    %v692 = vsel %vm686, %v690, %v585
    %v693 = vld [vmem:[#allocation3 + $0x10] sm:$0xff]
    %v694 = vsel %vm686, %v682, 0.0
    %v695 = vadd.f32 %v693, %v694
    %696 = vst.msk [vmem:[#allocation3 + $0x10] sm:$0xff] %vm175, %v695
    %v697 = vld [vmem:[#allocation3 + $0x28] sm:$0xff]
    %699 = vrot.lane.b32.xlu0 %v694, 96
    %v700 = vpop.permute.xlu0 %699
    %v702 = vadd.f32 %v697, %v700
    %703 = vst.msk [vmem:[#allocation3 + $0x28] sm:$0xff] %vm175, %v702
    %v704 = vld [vmem:[#allocation2 + $0x18] sm:$0xff]
    %v705 = vld [vmem:[#allocation2 + $0x20] sm:$0xff]
    %v706 = vsel %vm349, %v704, %v705
    %v707 = vunpack.c.l.bf16 %v706
    %v708 = vunpack.c.h.bf16 %v706
    %v709 = vpack.c.bf16 %v687, %v687
    %v711 = vsel %vm393, %v709, 0
    %713 = vmatprep.subr.bf16.mxu0 0
    %714 = vmatpush1.bf16.msra.mxu0 0
    %715 = vmatprep.subr.bf16.mxu0 0
    %716 = vmatpush1.bf16.msra.mxu0 0
    %717 = vmatprep.subr.bf16.mxu0 0
    %718 = vmatpush1.bf16.msra.mxu0 0
    %719 = vmatprep.subr.bf16.mxu0 0
    %720 = vmatpush1.bf16.msra.mxu0 0
    %721 = vmatprep.subr.bf16.mxu0 %v384
    %722 = vmatpush1.bf16.msra.mxu0 %v383
    %723 = vmatprep.subr.bf16.mxu0 %v382
    %724 = vmatpush1.bf16.msra.mxu0 %v381
    %725 = vmatprep.subr.bf16.mxu0 %v380
    %726 = vmatpush1.bf16.msra.mxu0 %v379
    %727 = vmatprep.subr.bf16.mxu0 %v378
    %728 = vmatpush1.bf16.msra.mxu0 %v377
    %729 = vmatprep.subr.bf16.mxu0 0
    %730 = vmatpush2.bf16.msra.mxu0 0
    %731 = vmatprep.subr.bf16.mxu0 0
    %732 = vmatpush2.bf16.msra.mxu0 0
    %733 = vmatprep.subr.bf16.mxu0 0
    %734 = vmatpush2.bf16.msra.mxu0 0
    %735 = vmatprep.subr.bf16.mxu0 0
    %736 = vmatpush2.bf16.msra.mxu0 0
    %737 = vmatprep.subr.bf16.mxu0 0
    %738 = vmatpush2.bf16.msra.mxu0 0
    %739 = vmatprep.subr.bf16.mxu0 0
    %740 = vmatpush2.bf16.msra.mxu0 0
    %741 = vmatprep.subr.bf16.mxu0 0
    %742 = vmatpush2.bf16.msra.mxu0 0
    %743 = vmatprep.subr.bf16.mxu0 0
    %744 = vmatpush2.bf16.msra.mxu0 0
    %745 = vmatprep.mubr.bf16.mxu0 0
    %746 = vmatmul.mubr.bf16.gmra.mxu0 %v711
    %v747 = vpop.f32.mrf.mxu0
    %v748 = vadd.f32 0.0, %v747
    %v749 = vpop.f32.mrf.mxu0
    %v750 = vadd.f32 0.0, %v749
    %v751 = vpop.f32.mrf.mxu0
    %v752 = vpop.f32.mrf.mxu0
    %753 = vdwg.mxu0
    %v754 = vadd.f32 %v707, %v748
    %v755 = vadd.f32 %v708, %v750
    %v756 = vxor.u32 %v754, 2147483648
    %v757 = vxor.u32 %v755, 2147483648
    %v758 = vmul.f32 %v756, 1.442695
    %v759 = vpow.pop %v758
    %v760 = vmul.f32 %v757, 1.442695
    %v761 = vpow.pop %v760
    %v762 = vadd.f32 %v759, 1.0
    %v763 = vadd.f32 %v761, 1.0
    %v764 = vrcp.pop %v762
    %v765 = vmul.f32 1.0, %v764
    %v766 = vrcp.pop %v763
    %v767 = vmul.f32 1.0, %v766
    %v768 = vtanh.pop %v755
    %770 = vrot.lane.b32.xlu0 %v692, 64
    %v771 = vpop.permute.xlu0 %770
    %v773 = vmul.f32 %v765, %v771
    %775 = vrot.lane.b32.xlu0 %v768, 64
    %v776 = vpop.permute.xlu0 %775
    %v778 = vmul.f32 %v765, %v776
    %780 = vrot.lane.b32.xlu0 %v778, 64
    %v781 = vpop.permute.xlu0 %780
    %v783 = vadd.f32 %v773, %v781
    %v784 = vtanh.pop %v783
    %786 = vrot.lane.b32.xlu0 %v784, 64
    %v787 = vpop.permute.xlu0 %786
    %v789 = vmul.f32 %v767, %v787
    %v790 = vld [vmem:[%s1 + $0x18] sm:$0xff]
    %v791 = vld [vmem:[%s1 + $0x20] sm:$0xff]
    %v792 = vsel %vm337, %v790, %v791
    %vm793 = vcmp.gt.f32.partialorder %v792, 0.5
    %v794 = vsel %vm793, %v789, %v687
    %796 = vrot.lane.b32.xlu0 %v783, 64
    %v797 = vpop.permute.xlu0 %796
    %v799 = vsel %vm793, %v797, %v692
    %v800 = vld [vmem:[#allocation3 + $0x18] sm:$0xff]
    %v801 = vsel %vm793, %v789, 0.0
    %v802 = vadd.f32 %v800, %v801
    %803 = vst.msk [vmem:[#allocation3 + $0x18] sm:$0xff] %vm175, %v802
    %v804 = vld [vmem:[#allocation3 + $0x20] sm:$0xff]
    %806 = vrot.lane.b32.xlu0 %v801, 96
    %v807 = vpop.permute.xlu0 %806
    %v809 = vadd.f32 %v804, %v807
    %810 = vst.msk [vmem:[#allocation3 + $0x20] sm:$0xff] %vm175, %v809
    %v811 = vld [vmem:[#allocation2 + $0x20] sm:$0xff]
    %v812 = vld [vmem:[#allocation2 + $0x18] sm:$0xff]
    %v813 = vsel %vm349, %v811, %v812
    %v814 = vunpack.c.l.bf16 %v813
    %v815 = vunpack.c.h.bf16 %v813
    %v816 = vpack.c.bf16 %v794, %v794
    %v818 = vsel %vm393, %v816, 0
    %820 = vmatprep.subr.bf16.mxu0 0
    %821 = vmatpush1.bf16.msra.mxu0 0
    %822 = vmatprep.subr.bf16.mxu0 0
    %823 = vmatpush1.bf16.msra.mxu0 0
    %824 = vmatprep.subr.bf16.mxu0 0
    %825 = vmatpush1.bf16.msra.mxu0 0
    %826 = vmatprep.subr.bf16.mxu0 0
    %827 = vmatpush1.bf16.msra.mxu0 0
    %828 = vmatprep.subr.bf16.mxu0 %v384
    %829 = vmatpush1.bf16.msra.mxu0 %v383
    %830 = vmatprep.subr.bf16.mxu0 %v382
    %831 = vmatpush1.bf16.msra.mxu0 %v381
    %832 = vmatprep.subr.bf16.mxu0 %v380
    %833 = vmatpush1.bf16.msra.mxu0 %v379
    %834 = vmatprep.subr.bf16.mxu0 %v378
    %835 = vmatpush1.bf16.msra.mxu0 %v377
    %836 = vmatprep.subr.bf16.mxu0 0
    %837 = vmatpush2.bf16.msra.mxu0 0
    %838 = vmatprep.subr.bf16.mxu0 0
    %839 = vmatpush2.bf16.msra.mxu0 0
    %840 = vmatprep.subr.bf16.mxu0 0
    %841 = vmatpush2.bf16.msra.mxu0 0
    %842 = vmatprep.subr.bf16.mxu0 0
    %843 = vmatpush2.bf16.msra.mxu0 0
    %844 = vmatprep.subr.bf16.mxu0 0
    %845 = vmatpush2.bf16.msra.mxu0 0
    %846 = vmatprep.subr.bf16.mxu0 0
    %847 = vmatpush2.bf16.msra.mxu0 0
    %848 = vmatprep.subr.bf16.mxu0 0
    %849 = vmatpush2.bf16.msra.mxu0 0
    %850 = vmatprep.subr.bf16.mxu0 0
    %851 = vmatpush2.bf16.msra.mxu0 0
    %852 = vmatprep.mubr.bf16.mxu0 0
    %853 = vmatmul.mubr.bf16.gmra.mxu0 %v818
    %v854 = vpop.f32.mrf.mxu0
    %v855 = vadd.f32 0.0, %v854
    %v856 = vpop.f32.mrf.mxu0
    %v857 = vadd.f32 0.0, %v856
    %v858 = vpop.f32.mrf.mxu0
    %v859 = vpop.f32.mrf.mxu0
    %860 = vdwg.mxu0
    %v861 = vadd.f32 %v814, %v855
    %v862 = vadd.f32 %v815, %v857
    %v863 = vxor.u32 %v861, 2147483648
    %v864 = vxor.u32 %v862, 2147483648
    %v865 = vmul.f32 %v863, 1.442695
    %v866 = vpow.pop %v865
    %v867 = vmul.f32 %v864, 1.442695
    %v868 = vpow.pop %v867
    %v869 = vadd.f32 %v866, 1.0
    %v870 = vadd.f32 %v868, 1.0
    %v871 = vrcp.pop %v869
    %v872 = vmul.f32 1.0, %v871
    %v873 = vrcp.pop %v870
    %v874 = vmul.f32 1.0, %v873
    %v875 = vtanh.pop %v862
    %877 = vrot.lane.b32.xlu0 %v799, 64
    %v878 = vpop.permute.xlu0 %877
    %v880 = vmul.f32 %v872, %v878
    %882 = vrot.lane.b32.xlu0 %v875, 64
    %v883 = vpop.permute.xlu0 %882
    %v885 = vmul.f32 %v872, %v883
    %887 = vrot.lane.b32.xlu0 %v885, 64
    %v888 = vpop.permute.xlu0 %887
    %v890 = vadd.f32 %v880, %v888
    %v891 = vtanh.pop %v890
    %893 = vrot.lane.b32.xlu0 %v891, 64
    %v894 = vpop.permute.xlu0 %893
    %v896 = vmul.f32 %v874, %v894
    %v897 = vld [vmem:[%s1 + $0x20] sm:$0xff]
    %v898 = vld [vmem:[%s1 + $0x18] sm:$0xff]
    %v899 = vsel %vm337, %v897, %v898
    %vm900 = vcmp.gt.f32.partialorder %v899, 0.5
    %v901 = vsel %vm900, %v896, %v794
    %903 = vrot.lane.b32.xlu0 %v890, 64
    %v904 = vpop.permute.xlu0 %903
    %v906 = vsel %vm900, %v904, %v799
    %v907 = vld [vmem:[#allocation3 + $0x20] sm:$0xff]
    %v908 = vsel %vm900, %v896, 0.0
    %v909 = vadd.f32 %v907, %v908
    %910 = vst.msk [vmem:[#allocation3 + $0x20] sm:$0xff] %vm175, %v909
    %v911 = vld [vmem:[#allocation3 + $0x18] sm:$0xff]
    %913 = vrot.lane.b32.xlu0 %v908, 96
    %v914 = vpop.permute.xlu0 %913
    %v916 = vadd.f32 %v911, %v914
    %917 = vst.msk [vmem:[#allocation3 + $0x18] sm:$0xff] %vm175, %v916
    %v918 = vld [vmem:[#allocation2 + $0x28] sm:$0xff]
    %v919 = vld [vmem:[#allocation2 + $0x10] sm:$0xff]
    %v920 = vsel %vm349, %v918, %v919
    %v921 = vunpack.c.l.bf16 %v920
    %v922 = vunpack.c.h.bf16 %v920
    %v923 = vpack.c.bf16 %v901, %v901
    %v925 = vsel %vm393, %v923, 0
    %927 = vmatprep.subr.bf16.mxu0 0
    %928 = vmatpush1.bf16.msra.mxu0 0
    %929 = vmatprep.subr.bf16.mxu0 0
    %930 = vmatpush1.bf16.msra.mxu0 0
    %931 = vmatprep.subr.bf16.mxu0 0
    %932 = vmatpush1.bf16.msra.mxu0 0
    %933 = vmatprep.subr.bf16.mxu0 0
    %934 = vmatpush1.bf16.msra.mxu0 0
    %935 = vmatprep.subr.bf16.mxu0 %v384
    %936 = vmatpush1.bf16.msra.mxu0 %v383
    %937 = vmatprep.subr.bf16.mxu0 %v382
    %938 = vmatpush1.bf16.msra.mxu0 %v381
    %939 = vmatprep.subr.bf16.mxu0 %v380
    %940 = vmatpush1.bf16.msra.mxu0 %v379
    %941 = vmatprep.subr.bf16.mxu0 %v378
    %942 = vmatpush1.bf16.msra.mxu0 %v377
    %943 = vmatprep.subr.bf16.mxu0 0
    %944 = vmatpush2.bf16.msra.mxu0 0
    %945 = vmatprep.subr.bf16.mxu0 0
    %946 = vmatpush2.bf16.msra.mxu0 0
    %947 = vmatprep.subr.bf16.mxu0 0
    %948 = vmatpush2.bf16.msra.mxu0 0
    %949 = vmatprep.subr.bf16.mxu0 0
    %950 = vmatpush2.bf16.msra.mxu0 0
    %951 = vmatprep.subr.bf16.mxu0 0
    %952 = vmatpush2.bf16.msra.mxu0 0
    %953 = vmatprep.subr.bf16.mxu0 0
    %954 = vmatpush2.bf16.msra.mxu0 0
    %955 = vmatprep.subr.bf16.mxu0 0
    %956 = vmatpush2.bf16.msra.mxu0 0
    %957 = vmatprep.subr.bf16.mxu0 0
    %958 = vmatpush2.bf16.msra.mxu0 0
    %959 = vmatprep.mubr.bf16.mxu0 0
    %960 = vmatmul.mubr.bf16.gmra.mxu0 %v925
    %v961 = vpop.f32.mrf.mxu0
    %v962 = vadd.f32 0.0, %v961
    %v963 = vpop.f32.mrf.mxu0
    %v964 = vadd.f32 0.0, %v963
    %v965 = vpop.f32.mrf.mxu0
    %v966 = vpop.f32.mrf.mxu0
    %967 = vdwg.mxu0
    %v968 = vadd.f32 %v921, %v962
    %v969 = vadd.f32 %v922, %v964
    %v970 = vxor.u32 %v968, 2147483648
    %v971 = vxor.u32 %v969, 2147483648
    %v972 = vmul.f32 %v970, 1.442695
    %v973 = vpow.pop %v972
    %v974 = vmul.f32 %v971, 1.442695
    %v975 = vpow.pop %v974
    %v976 = vadd.f32 %v973, 1.0
    %v977 = vadd.f32 %v975, 1.0
    %v978 = vrcp.pop %v976
    %v979 = vmul.f32 1.0, %v978
    %v980 = vrcp.pop %v977
    %v981 = vmul.f32 1.0, %v980
    %v982 = vtanh.pop %v969
    %984 = vrot.lane.b32.xlu0 %v906, 64
    %v985 = vpop.permute.xlu0 %984
    %v987 = vmul.f32 %v979, %v985
    %989 = vrot.lane.b32.xlu0 %v982, 64
    %v990 = vpop.permute.xlu0 %989
    %v992 = vmul.f32 %v979, %v990
    %994 = vrot.lane.b32.xlu0 %v992, 64
    %v995 = vpop.permute.xlu0 %994
    %v997 = vadd.f32 %v987, %v995
    %v998 = vtanh.pop %v997
    %1000 = vrot.lane.b32.xlu0 %v998, 64
    %v1001 = vpop.permute.xlu0 %1000
    %v1003 = vmul.f32 %v981, %v1001
    %v1004 = vld [vmem:[%s1 + $0x28] sm:$0xff]
    %v1005 = vld [vmem:[%s1 + $0x10] sm:$0xff]
    %v1006 = vsel %vm337, %v1004, %v1005
    %vm1007 = vcmp.gt.f32.partialorder %v1006, 0.5
    %v1008 = vsel %vm1007, %v1003, %v901
    %1010 = vrot.lane.b32.xlu0 %v997, 64
    %v1011 = vpop.permute.xlu0 %1010
    %v1013 = vsel %vm1007, %v1011, %v906
    %v1014 = vld [vmem:[#allocation3 + $0x28] sm:$0xff]
    %v1015 = vsel %vm1007, %v1003, 0.0
    %v1016 = vadd.f32 %v1014, %v1015
    %1017 = vst.msk [vmem:[#allocation3 + $0x28] sm:$0xff] %vm175, %v1016
    %v1018 = vld [vmem:[#allocation3 + $0x10] sm:$0xff]
    %1020 = vrot.lane.b32.xlu0 %v1015, 96
    %v1021 = vpop.permute.xlu0 %1020
    %v1023 = vadd.f32 %v1018, %v1021
    %1024 = vst.msk [vmem:[#allocation3 + $0x10] sm:$0xff] %vm175, %v1023
    %v1025 = vld [vmem:[#allocation2 + $0x30] sm:$0xff]
    %v1026 = vld [vmem:[#allocation2 + $0x8] sm:$0xff]
    %v1027 = vsel %vm349, %v1025, %v1026
    %v1028 = vunpack.c.l.bf16 %v1027
    %v1029 = vunpack.c.h.bf16 %v1027
    %v1030 = vpack.c.bf16 %v1008, %v1008
    %v1032 = vsel %vm393, %v1030, 0
    %1034 = vmatprep.subr.bf16.mxu0 0
    %1035 = vmatpush1.bf16.msra.mxu0 0
    %1036 = vmatprep.subr.bf16.mxu0 0
    %1037 = vmatpush1.bf16.msra.mxu0 0
    %1038 = vmatprep.subr.bf16.mxu0 0
    %1039 = vmatpush1.bf16.msra.mxu0 0
    %1040 = vmatprep.subr.bf16.mxu0 0
    %1041 = vmatpush1.bf16.msra.mxu0 0
    %1042 = vmatprep.subr.bf16.mxu0 %v384
    %1043 = vmatpush1.bf16.msra.mxu0 %v383
    %1044 = vmatprep.subr.bf16.mxu0 %v382
    %1045 = vmatpush1.bf16.msra.mxu0 %v381
    %1046 = vmatprep.subr.bf16.mxu0 %v380
    %1047 = vmatpush1.bf16.msra.mxu0 %v379
    %1048 = vmatprep.subr.bf16.mxu0 %v378
    %1049 = vmatpush1.bf16.msra.mxu0 %v377
    %1050 = vmatprep.subr.bf16.mxu0 0
    %1051 = vmatpush2.bf16.msra.mxu0 0
    %1052 = vmatprep.subr.bf16.mxu0 0
    %1053 = vmatpush2.bf16.msra.mxu0 0
    %1054 = vmatprep.subr.bf16.mxu0 0
    %1055 = vmatpush2.bf16.msra.mxu0 0
    %1056 = vmatprep.subr.bf16.mxu0 0
    %1057 = vmatpush2.bf16.msra.mxu0 0
    %1058 = vmatprep.subr.bf16.mxu0 0
    %1059 = vmatpush2.bf16.msra.mxu0 0
    %1060 = vmatprep.subr.bf16.mxu0 0
    %1061 = vmatpush2.bf16.msra.mxu0 0
    %1062 = vmatprep.subr.bf16.mxu0 0
    %1063 = vmatpush2.bf16.msra.mxu0 0
    %1064 = vmatprep.subr.bf16.mxu0 0
    %1065 = vmatpush2.bf16.msra.mxu0 0
    %1066 = vmatprep.mubr.bf16.mxu0 0
    %1067 = vmatmul.mubr.bf16.gmra.mxu0 %v1032
    %v1068 = vpop.f32.mrf.mxu0
    %v1069 = vadd.f32 0.0, %v1068
    %v1070 = vpop.f32.mrf.mxu0
    %v1071 = vadd.f32 0.0, %v1070
    %v1072 = vpop.f32.mrf.mxu0
    %v1073 = vpop.f32.mrf.mxu0
    %1074 = vdwg.mxu0
    %v1075 = vadd.f32 %v1028, %v1069
    %v1076 = vadd.f32 %v1029, %v1071
    %v1077 = vxor.u32 %v1075, 2147483648
    %v1078 = vxor.u32 %v1076, 2147483648
    %v1079 = vmul.f32 %v1077, 1.442695
    %v1080 = vpow.pop %v1079
    %v1081 = vmul.f32 %v1078, 1.442695
    %v1082 = vpow.pop %v1081
    %v1083 = vadd.f32 %v1080, 1.0
    %v1084 = vadd.f32 %v1082, 1.0
    %v1085 = vrcp.pop %v1083
    %v1086 = vmul.f32 1.0, %v1085
    %v1087 = vrcp.pop %v1084
    %v1088 = vmul.f32 1.0, %v1087
    %v1089 = vtanh.pop %v1076
    %1091 = vrot.lane.b32.xlu0 %v1013, 64
    %v1092 = vpop.permute.xlu0 %1091
    %v1094 = vmul.f32 %v1086, %v1092
    %1096 = vrot.lane.b32.xlu0 %v1089, 64
    %v1097 = vpop.permute.xlu0 %1096
    %v1099 = vmul.f32 %v1086, %v1097
    %1101 = vrot.lane.b32.xlu0 %v1099, 64
    %v1102 = vpop.permute.xlu0 %1101
    %v1104 = vadd.f32 %v1094, %v1102
    %v1105 = vtanh.pop %v1104
    %1107 = vrot.lane.b32.xlu0 %v1105, 64
    %v1108 = vpop.permute.xlu0 %1107
    %v1110 = vmul.f32 %v1088, %v1108
    %v1111 = vld [vmem:[%s1 + $0x30] sm:$0xff]
    %v1112 = vld [vmem:[%s1 + $0x8] sm:$0xff]
    %v1113 = vsel %vm337, %v1111, %v1112
    %vm1114 = vcmp.gt.f32.partialorder %v1113, 0.5
    %v1115 = vsel %vm1114, %v1110, %v1008
    %1117 = vrot.lane.b32.xlu0 %v1104, 64
    %v1118 = vpop.permute.xlu0 %1117
    %v1120 = vsel %vm1114, %v1118, %v1013
    %v1121 = vld [vmem:[#allocation3 + $0x30] sm:$0xff]
    %v1122 = vsel %vm1114, %v1110, 0.0
    %v1123 = vadd.f32 %v1121, %v1122
    %1124 = vst.msk [vmem:[#allocation3 + $0x30] sm:$0xff] %vm175, %v1123
    %v1125 = vld [vmem:[#allocation3 + $0x8] sm:$0xff]
    %1127 = vrot.lane.b32.xlu0 %v1122, 96
    %v1128 = vpop.permute.xlu0 %1127
    %v1130 = vadd.f32 %v1125, %v1128
    %1131 = vst.msk [vmem:[#allocation3 + $0x8] sm:$0xff] %vm175, %v1130
    %v1132 = vld [vmem:[#allocation2 + $0x38] sm:$0xff]
    %v1133 = vld [vmem:[#allocation2] sm:$0xff]
    %v1134 = vsel %vm349, %v1132, %v1133
    %v1135 = vunpack.c.l.bf16 %v1134
    %v1136 = vunpack.c.h.bf16 %v1134
    %v1137 = vpack.c.bf16 %v1115, %v1115
    %v1139 = vsel %vm393, %v1137, 0
    %1141 = vmatprep.subr.bf16.mxu0 0
    %1142 = vmatpush1.bf16.msra.mxu0 0
    %1143 = vmatprep.subr.bf16.mxu0 0
    %1144 = vmatpush1.bf16.msra.mxu0 0
    %1145 = vmatprep.subr.bf16.mxu0 0
    %1146 = vmatpush1.bf16.msra.mxu0 0
    %1147 = vmatprep.subr.bf16.mxu0 0
    %1148 = vmatpush1.bf16.msra.mxu0 0
    %1149 = vmatprep.subr.bf16.mxu0 %v384
    %1150 = vmatpush1.bf16.msra.mxu0 %v383
    %1151 = vmatprep.subr.bf16.mxu0 %v382
    %1152 = vmatpush1.bf16.msra.mxu0 %v381
    %1153 = vmatprep.subr.bf16.mxu0 %v380
    %1154 = vmatpush1.bf16.msra.mxu0 %v379
    %1155 = vmatprep.subr.bf16.mxu0 %v378
    %1156 = vmatpush1.bf16.msra.mxu0 %v377
    %1157 = vmatprep.subr.bf16.mxu0 0
    %1158 = vmatpush2.bf16.msra.mxu0 0
    %1159 = vmatprep.subr.bf16.mxu0 0
    %1160 = vmatpush2.bf16.msra.mxu0 0
    %1161 = vmatprep.subr.bf16.mxu0 0
    %1162 = vmatpush2.bf16.msra.mxu0 0
    %1163 = vmatprep.subr.bf16.mxu0 0
    %1164 = vmatpush2.bf16.msra.mxu0 0
    %1165 = vmatprep.subr.bf16.mxu0 0
    %1166 = vmatpush2.bf16.msra.mxu0 0
    %1167 = vmatprep.subr.bf16.mxu0 0
    %1168 = vmatpush2.bf16.msra.mxu0 0
    %1169 = vmatprep.subr.bf16.mxu0 0
    %1170 = vmatpush2.bf16.msra.mxu0 0
    %1171 = vmatprep.subr.bf16.mxu0 0
    %1172 = vmatpush2.bf16.msra.mxu0 0
    %1173 = vmatprep.mubr.bf16.mxu0 0
    %1174 = vmatmul.mubr.bf16.gmra.mxu0 %v1139
    %v1175 = vpop.f32.mrf.mxu0
    %v1176 = vadd.f32 0.0, %v1175
    %v1177 = vpop.f32.mrf.mxu0
    %v1178 = vadd.f32 0.0, %v1177
    %v1179 = vpop.f32.mrf.mxu0
    %v1180 = vpop.f32.mrf.mxu0
    %1181 = vdwg.mxu0
    %v1182 = vadd.f32 %v1135, %v1176
    %v1183 = vadd.f32 %v1136, %v1178
    %v1184 = vxor.u32 %v1182, 2147483648
    %v1185 = vxor.u32 %v1183, 2147483648
    %v1186 = vmul.f32 %v1184, 1.442695
    %v1187 = vpow.pop %v1186
    %v1188 = vmul.f32 %v1185, 1.442695
    %v1189 = vpow.pop %v1188
    %v1190 = vadd.f32 %v1187, 1.0
    %v1191 = vadd.f32 %v1189, 1.0
    %v1192 = vrcp.pop %v1190
    %v1193 = vmul.f32 1.0, %v1192
    %v1194 = vrcp.pop %v1191
    %v1195 = vmul.f32 1.0, %v1194
    %v1196 = vtanh.pop %v1183
    %1198 = vrot.lane.b32.xlu0 %v1120, 64
    %v1199 = vpop.permute.xlu0 %1198
    %v1201 = vmul.f32 %v1193, %v1199
    %1203 = vrot.lane.b32.xlu0 %v1196, 64
    %v1204 = vpop.permute.xlu0 %1203
    %v1206 = vmul.f32 %v1193, %v1204
    %1208 = vrot.lane.b32.xlu0 %v1206, 64
    %v1209 = vpop.permute.xlu0 %1208
    %v1211 = vadd.f32 %v1201, %v1209
    %v1212 = vtanh.pop %v1211
    %1214 = vrot.lane.b32.xlu0 %v1212, 64
    %v1215 = vpop.permute.xlu0 %1214
    %v1217 = vmul.f32 %v1195, %v1215
    %v1218 = vld [vmem:[%s1 + $0x38] sm:$0xff]
    %v1219 = vld [vmem:[%s1] sm:$0xff]
    %v1220 = vsel %vm337, %v1218, %v1219
    %vm1221 = vcmp.gt.f32.partialorder %v1220, 0.5
    %v1222 = vld [vmem:[#allocation3 + $0x38] sm:$0xff]
    %v1223 = vsel %vm1221, %v1217, 0.0
    %v1224 = vadd.f32 %v1222, %v1223
    %1225 = vst.msk [vmem:[#allocation3 + $0x38] sm:$0xff] %vm175, %v1224
    %v1226 = vld [vmem:[#allocation3] sm:$0xff]
    %1228 = vrot.lane.b32.xlu0 %v1223, 96
    %v1229 = vpop.permute.xlu0 %1228
    %v1231 = vadd.f32 %v1226, %v1229
    %1232 = vst.msk [vmem:[#allocation3] sm:$0xff] %vm175, %v1231
    %v1233 = vld [vmem:[#allocation3] sm:$0xff]
    %v1234 = vld [vmem:[#allocation3 + $0x8] sm:$0xff]
    %v1235 = vld [vmem:[#allocation3 + $0x10] sm:$0xff]
    %v1236 = vld [vmem:[#allocation3 + $0x18] sm:$0xff]
    %v1237 = vld [vmem:[#allocation3 + $0x20] sm:$0xff]
    %v1238 = vld [vmem:[#allocation3 + $0x28] sm:$0xff]
    %v1239 = vld [vmem:[#allocation3 + $0x30] sm:$0xff]
    %v1240 = vld [vmem:[#allocation3 + $0x38] sm:$0xff]
    %v1241 = vpack.c.bf16 %v1234, %v1233
    %v1242 = vpack.c.bf16 %v1236, %v1235
    %v1243 = vpack.c.bf16 %v1238, %v1237
    %v1244 = vpack.c.bf16 %v1240, %v1239
    %v1245 = vld [vmem:[#allocation12] sm:$0xf]
    %v1246 = vld [vmem:[#allocation12 + $0x4] sm:$0xf]
    %v1247 = vld [vmem:[#allocation12 + $0x8] sm:$0xf]
    %v1248 = vld [vmem:[#allocation12 + $0xc] sm:$0xf]
    %v1249 = vld [vmem:[#allocation14] sm:$0x1]
    %v1251 = vlaneseq
    %v1252 = vshrl.u32 %v1251, 7
    %v1253 = vsub.s32 0, %v1252
    %v1254 = vrot.slane %v1249, %v1253
    %v1260 = vunpack.c.l.b16 %v1245
    %v1261 = vunpack.c.l.b16 %v1246
    %v1262 = vunpack.c.l.b16 %v1247
    %v1263 = vunpack.c.l.b16 %v1248
    %v1264 = vpack.c.b16 %v1261, %v1260
    %v1265 = vpack.c.b16 %v1263, %v1262
    %v1269 = vsel %vm175, %v1241, 0
    %v1272 = vsel %vm175, %v1242, 0
    %v1275 = vsel %vm175, %v1243, 0
    %v1278 = vsel %vm175, %v1244, 0
    %1280 = vmatprep.subr.bf16.mxu0 0
    %1281 = vmatpush1.bf16.msra.mxu0 0
    %1282 = vmatprep.subr.bf16.mxu0 0
    %1283 = vmatpush1.bf16.msra.mxu0 0
    %1284 = vmatprep.subr.bf16.mxu0 0
    %1285 = vmatpush1.bf16.msra.mxu0 0
    %1286 = vmatprep.subr.bf16.mxu0 0
    %1287 = vmatpush1.bf16.msra.mxu0 0
    %1288 = vmatprep.subr.bf16.mxu0 0
    %1289 = vmatpush1.bf16.msra.mxu0 0
    %1290 = vmatprep.subr.bf16.mxu0 0
    %1291 = vmatpush1.bf16.msra.mxu0 0
    %1292 = vmatprep.subr.bf16.mxu0 0
    %1293 = vmatpush1.bf16.msra.mxu0 %v1265
    %1294 = vmatprep.subr.bf16.mxu0 0
    %1295 = vmatpush1.bf16.msra.mxu0 %v1264
    %1296 = vmatprep.subr.bf16.mxu0 0
    %1297 = vmatpush2.bf16.msra.mxu0 0
    %1298 = vmatprep.subr.bf16.mxu0 0
    %1299 = vmatpush2.bf16.msra.mxu0 0
    %1300 = vmatprep.subr.bf16.mxu0 0
    %1301 = vmatpush2.bf16.msra.mxu0 0
    %1302 = vmatprep.subr.bf16.mxu0 0
    %1303 = vmatpush2.bf16.msra.mxu0 0
    %1304 = vmatprep.subr.bf16.mxu0 0
    %1305 = vmatpush2.bf16.msra.mxu0 0
    %1306 = vmatprep.subr.bf16.mxu0 0
    %1307 = vmatpush2.bf16.msra.mxu0 0
    %1308 = vmatprep.subr.bf16.mxu0 0
    %1309 = vmatpush2.bf16.msra.mxu0 0
    %1310 = vmatprep.subr.bf16.mxu0 0
    %1311 = vmatpush2.bf16.msra.mxu0 0
    %1312 = vmatprep.mubr.bf16.mxu0 0
    %1313 = vmatmul.mubr.bf16.gmra.mxu0 %v1269
    %v1314 = vpop.f32.mrf.mxu0
    %v1315 = vadd.f32 %v1254, %v1314
    %v1316 = vpop.f32.mrf.mxu0
    %v1317 = vpop.f32.mrf.mxu0
    %v1318 = vadd.f32 %v1254, %v1317
    %v1319 = vpop.f32.mrf.mxu0
    %1320 = vmatprep.mubr.bf16.mxu0 0
    %1321 = vmatmul.mubr.bf16.gmra.mxu0 %v1272
    %v1322 = vpop.f32.mrf.mxu0
    %v1323 = vadd.f32 %v1254, %v1322
    %v1324 = vpop.f32.mrf.mxu0
    %v1325 = vpop.f32.mrf.mxu0
    %v1326 = vadd.f32 %v1254, %v1325
    %v1327 = vpop.f32.mrf.mxu0
    %1328 = vmatprep.mubr.bf16.mxu0 0
    %1329 = vmatmul.mubr.bf16.gmra.mxu0 %v1275
    %v1330 = vpop.f32.mrf.mxu0
    %v1331 = vadd.f32 %v1254, %v1330
    %v1332 = vpop.f32.mrf.mxu0
    %v1333 = vpop.f32.mrf.mxu0
    %v1334 = vadd.f32 %v1254, %v1333
    %v1335 = vpop.f32.mrf.mxu0
    %1336 = vmatprep.mubr.bf16.mxu0 0
    %1337 = vmatmul.mubr.bf16.gmra.mxu0 %v1278
    %v1338 = vpop.f32.mrf.mxu0
    %v1339 = vadd.f32 %v1254, %v1338
    %v1340 = vpop.f32.mrf.mxu0
    %v1341 = vpop.f32.mrf.mxu0
    %v1342 = vadd.f32 %v1254, %v1341
    %v1343 = vpop.f32.mrf.mxu0
    %1344 = vdwg.mxu0
    %v1345 = vmax.f32 %v1315, 0.0
    %v1346 = vmax.f32 %v1318, 0.0
    %v1347 = vmax.f32 %v1323, 0.0
    %v1348 = vmax.f32 %v1326, 0.0
    %v1349 = vmax.f32 %v1331, 0.0
    %v1350 = vmax.f32 %v1334, 0.0
    %v1351 = vmax.f32 %v1339, 0.0
    %v1352 = vmax.f32 %v1342, 0.0
    %v1353 = vpack.c.bf16 %v1346, %v1345
    %v1354 = vpack.c.bf16 %v1348, %v1347
    %v1355 = vpack.c.bf16 %v1350, %v1349
    %v1356 = vpack.c.bf16 %v1352, %v1351
    %v1357 = vld [vmem:[%s8] sm:$0xf]
    %v1358 = vld [vmem:[%s8 + $0x4] sm:$0xf]
    %v1359 = vld [vmem:[%s8 + $0x8] sm:$0xf]
    %v1360 = vld [vmem:[%s8 + $0xc] sm:$0xf]
    %v1361 = vld [vmem:[%s8 + $0x10] sm:$0xf]
    %v1362 = vld [vmem:[%s8 + $0x14] sm:$0xf]
    %v1363 = vld [vmem:[%s8 + $0x18] sm:$0xf]
    %v1364 = vld [vmem:[%s8 + $0x1c] sm:$0xf]
    %v1373 = vunpack.c.l.b16 %v1357
    %v1374 = vunpack.c.l.b16 %v1358
    %v1375 = vunpack.c.l.b16 %v1359
    %v1376 = vunpack.c.l.b16 %v1360
    %v1377 = vunpack.c.l.b16 %v1361
    %v1378 = vunpack.c.l.b16 %v1362
    %v1379 = vunpack.c.l.b16 %v1363
    %v1380 = vunpack.c.l.b16 %v1364
    %v1381 = vpack.c.b16 %v1374, %v1373
    %v1382 = vpack.c.b16 %v1376, %v1375
    %v1383 = vpack.c.b16 %v1378, %v1377
    %v1384 = vpack.c.b16 %v1380, %v1379
    %v1390 = vsel %vm393, %v1353, 0
    %v1393 = vsel %vm393, %v1354, 0
    %v1396 = vsel %vm393, %v1355, 0
    %v1399 = vsel %vm393, %v1356, 0
    %1401 = vmatprep.subr.bf16.mxu0 0
    %1402 = vmatpush1.bf16.msra.mxu0 0
    %1403 = vmatprep.subr.bf16.mxu0 0
    %1404 = vmatpush1.bf16.msra.mxu0 0
    %1405 = vmatprep.subr.bf16.mxu0 0
    %1406 = vmatpush1.bf16.msra.mxu0 0
    %1407 = vmatprep.subr.bf16.mxu0 0
    %1408 = vmatpush1.bf16.msra.mxu0 0
    %1409 = vmatprep.subr.bf16.mxu0 0
    %1410 = vmatpush1.bf16.msra.mxu0 %v1384
    %1411 = vmatprep.subr.bf16.mxu0 0
    %1412 = vmatpush1.bf16.msra.mxu0 %v1383
    %1413 = vmatprep.subr.bf16.mxu0 0
    %1414 = vmatpush1.bf16.msra.mxu0 %v1382
    %1415 = vmatprep.subr.bf16.mxu0 0
    %1416 = vmatpush1.bf16.msra.mxu0 %v1381
    %1417 = vmatprep.subr.bf16.mxu0 0
    %1418 = vmatpush2.bf16.msra.mxu0 0
    %1419 = vmatprep.subr.bf16.mxu0 0
    %1420 = vmatpush2.bf16.msra.mxu0 0
    %1421 = vmatprep.subr.bf16.mxu0 0
    %1422 = vmatpush2.bf16.msra.mxu0 0
    %1423 = vmatprep.subr.bf16.mxu0 0
    %1424 = vmatpush2.bf16.msra.mxu0 0
    %1425 = vmatprep.subr.bf16.mxu0 0
    %1426 = vmatpush2.bf16.msra.mxu0 0
    %1427 = vmatprep.subr.bf16.mxu0 0
    %1428 = vmatpush2.bf16.msra.mxu0 0
    %1429 = vmatprep.subr.bf16.mxu0 0
    %1430 = vmatpush2.bf16.msra.mxu0 0
    %1431 = vmatprep.subr.bf16.mxu0 0
    %1432 = vmatpush2.bf16.msra.mxu0 0
    %1433 = vmatprep.mubr.bf16.mxu0 0
    %1434 = vmatmul.mubr.bf16.gmra.mxu0 %v1390
    %v1435 = vpop.f32.mrf.mxu0
    %v1436 = vadd.f32 0.0, %v1435
    %v1437 = vpop.f32.mrf.mxu0
    %v1438 = vpop.f32.mrf.mxu0
    %v1439 = vadd.f32 0.0, %v1438
    %v1440 = vpop.f32.mrf.mxu0
    %1441 = vmatprep.mubr.bf16.mxu0 0
    %1442 = vmatmul.mubr.bf16.gmra.mxu0 %v1393
    %v1443 = vpop.f32.mrf.mxu0
    %v1444 = vadd.f32 0.0, %v1443
    %v1445 = vpop.f32.mrf.mxu0
    %v1446 = vpop.f32.mrf.mxu0
    %v1447 = vadd.f32 0.0, %v1446
    %v1448 = vpop.f32.mrf.mxu0
    %1449 = vmatprep.mubr.bf16.mxu0 0
    %1450 = vmatmul.mubr.bf16.gmra.mxu0 %v1396
    %v1451 = vpop.f32.mrf.mxu0
    %v1452 = vadd.f32 0.0, %v1451
    %v1453 = vpop.f32.mrf.mxu0
    %v1454 = vpop.f32.mrf.mxu0
    %v1455 = vadd.f32 0.0, %v1454
    %v1456 = vpop.f32.mrf.mxu0
    %1457 = vmatprep.mubr.bf16.mxu0 0
    %1458 = vmatmul.mubr.bf16.gmra.mxu0 %v1399
    %v1459 = vpop.f32.mrf.mxu0
    %v1460 = vadd.f32 0.0, %v1459
    %v1461 = vpop.f32.mrf.mxu0
    %v1462 = vpop.f32.mrf.mxu0
    %v1463 = vadd.f32 0.0, %v1462
    %v1464 = vpop.f32.mrf.mxu0
    %1465 = vdwg.mxu0
    %v1466 = vlaneseq
    %v1467 = vand.u32 %v1466, 127
    %vm1468 = vcmp.eq.s32.totalorder %v1467, 0
    %v1469 = vsel %vm1468, %v1436, 0.0
    %v1470 = vadd.f32 %v1469, 0.0
    %vm1471 = vcmp.eq.s32.totalorder %v1467, 1
    %v1472 = vsel %vm1471, %v1439, 0.0
    %v1473 = vadd.f32 %v1470, %v1472
    %vm1474 = vcmp.eq.s32.totalorder %v1467, 2
    %v1475 = vsel %vm1474, %v1444, 0.0
    %v1476 = vadd.f32 %v1473, %v1475
    %vm1477 = vcmp.eq.s32.totalorder %v1467, 3
    %v1478 = vsel %vm1477, %v1447, 0.0
    %v1479 = vadd.f32 %v1476, %v1478
    %vm1480 = vcmp.eq.s32.totalorder %v1467, 4
    %v1481 = vsel %vm1480, %v1452, 0.0
    %v1482 = vadd.f32 %v1479, %v1481
    %vm1483 = vcmp.eq.s32.totalorder %v1467, 5
    %v1484 = vsel %vm1483, %v1455, 0.0
    %v1485 = vadd.f32 %v1482, %v1484
    %vm1486 = vcmp.eq.s32.totalorder %v1467, 6
    %v1487 = vsel %vm1486, %v1460, 0.0
    %v1488 = vadd.f32 %v1485, %v1487
    %vm1489 = vcmp.eq.s32.totalorder %v1467, 7
    %v1490 = vsel %vm1489, %v1463, 0.0
    %v1491 = vadd.f32 %v1488, %v1490
    %v1492 = vld [vmem:[#allocation4] sm:$0x1]
    %v1494 = vlaneseq
    %v1495 = vshrl.u32 %v1494, 7
    %v1496 = vsub.s32 0, %v1495
    %v1497 = vrot.slane %v1492, %v1496
    %1498 = vset.pattern.permute.xlu0 0
    %1499 = vperm.xlu0 %1498, %v1497
    %v1500 = vpop.permute.xlu0 %1499
    %v1502 = vadd.f32 %v1491, %v1500
    %vm1503 = vcmask 64512
    %v1504 = vsel %vm1503, %v1502, -inf
    %1505 = vmax.xlane.f32.xlu0 %v1504
    %v1506 = vpop.xlane.xlu0 %1505
    %v1507 = vsub.f32 %v1502, %v1506
    %v1508 = vmul.f32 %v1507, 1.442695
    %v1509 = vpow.pop %v1508
    %v1510 = vsel %vm1503, %v1509, 0.0
    %1511 = vadd.xlane.f32.xlu0 %v1510
    %v1512 = vpop.xlane.xlu0 %1511
    %v1513 = vrcp.pop %v1512
    %v1514 = vmul.f32 %v1509, %v1513
    %1515 = vst.msk [vmem:[#allocation15] sm:$0xff] %vm1503, %v1514
    %v1516 = vld [vmem:[#allocation4] sm:$0x1]
    %v1518 = vlaneseq
    %v1519 = vshrl.u32 %v1518, 7
    %v1520 = vsub.s32 0, %v1519
    %v1521 = vrot.slane %v1516, %v1520
    %v1523 = vsub.f32 %v1521, %v1506
    %1525 = vset.pattern.permute.xlu0 0
    %1526 = vperm.xlu0 %1525, %v1523
    %v1527 = vpop.permute.xlu0 %1526
    %v1529 = vadd.f32 %v1436, %v1527
    %v1530 = vmul.f32 %v1529, 1.442695
    %v1531 = vpow.pop %v1530
    %v1532 = vmul.f32 %v1233, %v1531
    %v1533 = vadd.f32 %v1532, 0.0
    %v1534 = vadd.f32 %v1439, %v1527
    %v1535 = vmul.f32 %v1534, 1.442695
    %v1536 = vpow.pop %v1535
    %v1537 = vmul.f32 %v1234, %v1536
    %v1538 = vadd.f32 %v1533, %v1537
    %v1539 = vadd.f32 %v1444, %v1527
    %v1540 = vmul.f32 %v1539, 1.442695
    %v1541 = vpow.pop %v1540
    %v1542 = vmul.f32 %v1235, %v1541
    %v1543 = vadd.f32 %v1538, %v1542
    %v1544 = vadd.f32 %v1447, %v1527
    %v1545 = vmul.f32 %v1544, 1.442695
    %v1546 = vpow.pop %v1545
    %v1547 = vmul.f32 %v1236, %v1546
    %v1548 = vadd.f32 %v1543, %v1547
    %v1549 = vadd.f32 %v1452, %v1527
    %v1550 = vmul.f32 %v1549, 1.442695
    %v1551 = vpow.pop %v1550
    %v1552 = vmul.f32 %v1237, %v1551
    %v1553 = vadd.f32 %v1548, %v1552
    %v1554 = vadd.f32 %v1455, %v1527
    %v1555 = vmul.f32 %v1554, 1.442695
    %v1556 = vpow.pop %v1555
    %v1557 = vmul.f32 %v1238, %v1556
    %v1558 = vadd.f32 %v1553, %v1557
    %v1559 = vadd.f32 %v1460, %v1527
    %v1560 = vmul.f32 %v1559, 1.442695
    %v1561 = vpow.pop %v1560
    %v1562 = vmul.f32 %v1239, %v1561
    %v1563 = vadd.f32 %v1558, %v1562
    %v1564 = vadd.f32 %v1463, %v1527
    %v1565 = vmul.f32 %v1564, 1.442695
    %v1566 = vpow.pop %v1565
    %v1567 = vmul.f32 %v1240, %v1566
    %v1568 = vadd.f32 %v1563, %v1567
    %v1569 = vmul.f32 %v1568, %v1513
    %v1570 = vld [vmem:[%s10] sm:$0x1]
    %v1572 = vlaneseq
    %v1573 = vshrl.u32 %v1572, 7
    %v1574 = vsub.s32 0, %v1573
    %v1575 = vrot.slane %v1570, %v1574
    %v1577 = vmul.f32 %v1569, %v1575
    %v1578 = vsel %vm175, %v1577, 0.0
    %1579 = vadd.xlane.f32.xlu0 %v1578
    %v1580 = vpop.xlane.xlu0 %1579
    %v1581 = vld [vmem:[#allocation5] sm:$0x1]
    %v1583 = vlaneseq
    %v1584 = vshrl.u32 %v1583, 7
    %v1585 = vsub.s32 0, %v1584
    %v1586 = vrot.slane %v1581, %v1585
    %v1588 = vadd.f32 %v1580, %v1586
    %vm1589 = vcmask 7168
    %1590 = vst.msk [vmem:[%s12] sm:$0xff] %vm1589, %v1588
    // Predicated region
    $region70: #{tpu_custom_call.1} parent=1 // pred_check
      _
    $region71: #{tpu_custom_call.1} parent=1 // pred_check_branch
      %1592 = sbr.rel (0) target = $region73
    $region72: #{tpu_custom_call.1} parent=1 // pred_region
      _
    $region73: #{tpu_custom_call.1} parent=1 // pred_fallthru
      _
    // Predicated region
    $region74: #{tpu_custom_call.1} parent=1 // pred_check
      _
    $region75: #{tpu_custom_call.1} parent=1 // pred_check_branch
      %1594 = sbr.rel (0) target = $region77
    $region76: #{tpu_custom_call.1} parent=1 // pred_region
      %s1596 = ssub.s32 128, 128
      %1597 = vsyncadd [#allocation8], %s1596
      %s1599 = sshll.u32 [#allocation15], 4
      %s1600 = int_to_ptr.vmem [resolvable:$true] %s1599
      %1602 = dma.vmem_to_hbm [thread:$0]  %s1600, 128, %s13, [#allocation8]
    $region77: #{tpu_custom_call.1} parent=1 // pred_fallthru
      _
    // Predicated region
    $region78: #{tpu_custom_call.1} parent=1 // pred_check
      _
    $region79: #{tpu_custom_call.1} parent=1 // pred_check_branch
      %1604 = sbr.rel (0) target = $region81
    $region80: #{tpu_custom_call.1} parent=1 // pred_region
      _
    $region81: #{tpu_custom_call.1} parent=1 // pred_fallthru
      _
    // Predicated region
    $region82: #{tpu_custom_call.1} parent=1 // pred_check
      _
    $region83: #{tpu_custom_call.1} parent=1 // pred_check_branch
      %1606 = sbr.rel (0) target = $region85
    $region84: #{tpu_custom_call.1} parent=1 // pred_region
      %1607 = dma.done [#allocation8], 128
    $region85: #{tpu_custom_call.1} parent=1 // pred_fallthru
      _
    %1608 = vsyncpa [#allocation7], 1
    %1609 = vsyncpa [#allocation10], 1
    %1610 = vsyncpa [#allocation13], 1
    %1611 = vsyncpa [#allocation8], 1

</llo_original>
